<compile_context>
chip_gen: v5e
topology: v5e:2x2
jax: 0.10.0
libtpu: 0.0.40
codegen_flags: <defaults>
</compile_context>

<pallas_src>
import jax
import jax.numpy as jnp
from jax.experimental import pallas as pl
from jax.experimental.pallas import tpu as pltpu

IN_DIM = 256                       # in_dim (also the hardcoded repeat factor)
OUT_DIM = 2 * IN_DIM               # out_dim = 512
AFF_HIDDEN = 1024
FUSED_COLS = AFF_HIDDEN + OUT_DIM  # 1536 = 12 x 128 lanes (aff | shortcut)
VEC_ROWS = 8                       # packed vector table = one sublane tile
BN_EPS = 1e-5


def att_fea_fusion_kernel(geo_ref, vis_ref, w_ref, vec_ref, out_ref):
    geo = geo_ref[...]                                   # (B, 256) f32
    vis = vis_ref[...]                                   # (B, 256) f32

    # One fused MXU pass per input stream (bf16 operands, f32 accumulation).
    # w_ref is (512, 1536) bf16; rows [0:256) belong to the geo half of the
    # concatenated input, rows [256:512) to the vis half; columns:
    #   [0:1024)    -> aff pre-activation (encoders folded into w1)
    #   [1024:1536) -> shortcut pre-BN
    t = (
        jnp.dot(geo.astype(jnp.bfloat16), w_ref[0:IN_DIM, :],
                preferred_element_type=jnp.float32)
        + jnp.dot(vis.astype(jnp.bfloat16), w_ref[IN_DIM:, :],
                  preferred_element_type=jnp.float32)
    )                                                    # (B, 1536) f32

    # Packed bias / BN / logit-diff vectors (single DMA, single sublane tile).
    b1    = vec_ref[0:1, :]                              # folded aff bias (1,1024)
    g1    = vec_ref[1:2, :]                              # BN(1024) gamma
    beta1 = vec_ref[2:3, :]                              # BN(1024) beta
    wd    = vec_ref[3:4, :]                              # w2[:,0] - w2[:,1]
    bs    = vec_ref[4:5, 0:OUT_DIM]                      # shortcut bias (1,512)
    gs    = vec_ref[5:6, 0:OUT_DIM]                      # BN(512) gamma
    betas = vec_ref[6:7, 0:OUT_DIM]                      # BN(512) beta
    bd    = vec_ref[7:8, 0:1]                            # b2[0] - b2[1]

    # aff: (folded Linear) -> BatchNorm1d (training-mode batch stats) -> ReLU
    h = t[:, :AFF_HIDDEN] + b1
    mu = jnp.mean(h, axis=0, keepdims=True)
    var = jnp.mean((h - mu) ** 2, axis=0, keepdims=True)   # biased (PyTorch BN)
    h = (h - mu) * jax.lax.rsqrt(var + BN_EPS) * g1 + beta1
    h = jnp.maximum(h, 0.0)

    # softmax over the 2 attention logits == sigmoid of the logit difference.
    d = jnp.sum(h * wd, axis=1, keepdims=True) + bd         # (B, 1)
    att0 = pl.reciprocal(1.0 + jnp.exp(-d), approx=True)    # EUP exp + vrcp
    att1 = 1.0 - att0

    # shortcut: Linear (already in t) -> BatchNorm1d (training-mode batch stats)
    res = t[:, AFF_HIDDEN:] + bs
    mu_s = jnp.mean(res, axis=0, keepdims=True)
    var_s = jnp.mean((res - mu_s) ** 2, axis=0, keepdims=True)
    res = (res - mu_s) * jax.lax.rsqrt(var_s + BN_EPS) * gs + betas

    # repeat_interleave gating + residual + ReLU, written as two lane slabs.
    out_ref[:, :IN_DIM] = jnp.maximum(geo * att0 + res[:, :IN_DIM], 0.0)
    out_ref[:, IN_DIM:] = jnp.maximum(vis * att1 + res[:, IN_DIM:], 0.0)


def fold_params(p):
    """One-time host-side folding (amortized across calls in a real model)."""
    w1_top = p["w1"][:IN_DIM, :]                          # (256, 1024)
    w1_bot = p["w1"][IN_DIM:, :]
    wg_fold = p["wg"] @ w1_top                            # geo_enc folded into w1
    wv_fold = p["wv"] @ w1_bot
    b1_fold = p["bg"] @ w1_top + p["bv"] @ w1_bot + p["b1"]

    big_g = jnp.concatenate([wg_fold, p["ws"][:IN_DIM, :]], axis=1)  # (256,1536)
    big_v = jnp.concatenate([wv_fold, p["ws"][IN_DIM:, :]], axis=1)
    w_fused = jnp.concatenate([big_g, big_v], axis=0)                # (512,1536)

    wd = (p["w2"][:, 0:1] - p["w2"][:, 1:2]).T            # (1, 1024)
    bd = p["b2"][0, 0] - p["b2"][0, 1]

    def pad1024(v):
        return jnp.pad(v, ((0, 0), (0, AFF_HIDDEN - v.shape[1])))

    vecs = jnp.concatenate(
        [b1_fold, p["g1"], p["beta1"], wd,
         pad1024(p["bs"]), pad1024(p["gs"]), pad1024(p["betas"]),
         pad1024(jnp.full((1, 1), bd, jnp.float32))],
        axis=0).astype(jnp.float32)                       # (8, 1024)

    return {
        "w_fused": w_fused.astype(jnp.bfloat16),          # bf16 -> half the HBM bytes
        "vecs": vecs,                                     # f32 epilogue params
    }


def att_fea_fusion(geo, vis, folded):
    B = geo.shape[0]
    args = (geo, vis, folded["w_fused"], folded["vecs"])
    vmem = pl.BlockSpec(memory_space=pltpu.MemorySpace.VMEM)
    flops = 2 * B * OUT_DIM * FUSED_COLS                  # the fused matmul
    bytes_accessed = (OUT_DIM * FUSED_COLS * 2            # bf16 weight slab
                      + VEC_ROWS * AFF_HIDDEN * 4         # packed vector table
                      + 2 * B * IN_DIM * 4                # geo, vis
                      + B * OUT_DIM * 4)                  # output
    return pl.pallas_call(
        att_fea_fusion_kernel,
        out_shape=jax.ShapeDtypeStruct((B, OUT_DIM), jnp.float32),
        in_specs=[vmem] * len(args),
        out_specs=vmem,
        compiler_params=pltpu.CompilerParams(
            vmem_limit_bytes=32 * 1024 * 1024),
        cost_estimate=pl.CostEstimate(
            flops=flops,
            transcendentals=B + AFF_HIDDEN + OUT_DIM,      # exp + rsqrt counts
            bytes_accessed=bytes_accessed),
    )(*args)


def init_params(key):
    """Deterministic synthetic parameters (shapes match the PyTorch module).

    Weight matrices are stored pre-transposed as (in_features, out_features).
    Biases / BN params are stored as (1, N) so they broadcast on the lane axis.
    """
    ks = jax.random.split(key, 10)
    n = jax.random.normal

    def w(k, i, o, scale=0.02):
        return (scale * n(k, (i, o))).astype(jnp.float32)

    def vec(k, o, scale=0.02):
        return (scale * n(k, (1, o))).astype(jnp.float32)

    params = {
        # geo_enc / vis_enc: Conv2d(C, C, 1) -> (C, C) linear
        "wg": w(ks[0], IN_DIM, IN_DIM), "bg": vec(ks[1], IN_DIM),
        "wv": w(ks[2], IN_DIM, IN_DIM), "bv": vec(ks[3], IN_DIM),
        # shortcut: Linear(512, 512) + BatchNorm1d(512)
        "ws": w(ks[4], OUT_DIM, OUT_DIM), "bs": vec(ks[5], OUT_DIM),
        "gs": (1.0 + 0.1 * n(ks[6], (1, OUT_DIM))).astype(jnp.float32),
        "betas": vec(ks[6], OUT_DIM, scale=0.1),
        # aff: Linear(512, 1024) + BN(1024) + ReLU + Linear(1024, 2)
        "w1": w(ks[7], OUT_DIM, AFF_HIDDEN), "b1": vec(ks[7], AFF_HIDDEN),
        "g1": (1.0 + 0.1 * n(ks[8], (1, AFF_HIDDEN))).astype(jnp.float32),
        "beta1": vec(ks[8], AFF_HIDDEN, scale=0.1),
        "w2": w(ks[9], AFF_HIDDEN, 2), "b2": vec(ks[9], 2),
    }
    return params


def reference_forward(geo, vis, p):
    """Pure-JAX f32 reference mirroring the PyTorch forward (training-mode BN)."""
    def bn(x, g, b):
        mu = jnp.mean(x, axis=0, keepdims=True)
        var = jnp.mean((x - mu) ** 2, axis=0, keepdims=True)
        return (x - mu) * jax.lax.rsqrt(var + BN_EPS) * g + b

    geo_e = geo @ p["wg"] + p["bg"]
    vis_e = vis @ p["wv"] + p["bv"]
    fus = jnp.concatenate([geo_e, vis_e], axis=1)
    h = jnp.maximum(bn(fus @ p["w1"] + p["b1"], p["g1"], p["beta1"]), 0.0)
    att = jax.nn.softmax(h @ p["w2"] + p["b2"], axis=1)
    att_rep = jnp.concatenate(
        [jnp.broadcast_to(att[:, 0:1], geo.shape),
         jnp.broadcast_to(att[:, 1:2], vis.shape)], axis=1)
    cat_in = jnp.concatenate([geo, vis], axis=1)
    fusion = cat_in * att_rep
    res = bn(cat_in @ p["ws"] + p["bs"], p["gs"], p["betas"])
    return jnp.maximum(fusion + res, 0.0)


if __name__ == "__main__":
    B = 8
    key = jax.random.PRNGKey(0)
    k_geo, k_vis, k_par = jax.random.split(key, 3)
    geo = jax.random.normal(k_geo, (B, IN_DIM), dtype=jnp.float32)
    vis = jax.random.normal(k_vis, (B, IN_DIM), dtype=jnp.float32)
    params = init_params(k_par)

    folded = fold_params(params)            # one-time weight folding / packing

    out = jax.block_until_ready(att_fea_fusion(geo, vis, folded))
    ref = jax.block_until_ready(reference_forward(geo, vis, params))

    assert out.shape == (B, OUT_DIM)
    assert bool(jnp.all(jnp.isfinite(out)))
    # bf16 MXU operands + approx reciprocal vs the f32 reference -> loose tol.
    max_err = float(jnp.max(jnp.abs(out - ref)))
    assert jnp.allclose(out, ref, rtol=2e-2, atol=2e-2), max_err

    print("KERNEL_OK")
</pallas_src>

<mosaic_0001>
module attributes {stable_mosaic.version = 11 : i64} {
  func.func @att_fea_fusion_kernel(%arg0: memref<8x256xf32, #tpu.memory_space<vmem>>, %arg1: memref<8x256xf32, #tpu.memory_space<vmem>>, %arg2: memref<512x1536xbf16, #tpu.memory_space<vmem>>, %arg3: memref<8x1024xf32, #tpu.memory_space<vmem>>, %arg4: memref<8x512xf32, #tpu.memory_space<vmem>>) attributes {dimension_semantics = [], scalar_prefetch = 0 : i64, scratch_operands = 0 : i64, tpu.core_type = #tpu.core_type<tc>} {
    %c0 = arith.constant 0 : index
    %c0_0 = arith.constant 0 : index
    %0 = vector.load %arg0[%c0, %c0_0] : memref<8x256xf32, #tpu.memory_space<vmem>>, vector<8x256xf32>
    %c0_1 = arith.constant 0 : index
    %c0_2 = arith.constant 0 : index
    %1 = vector.load %arg1[%c0_1, %c0_2] : memref<8x256xf32, #tpu.memory_space<vmem>>, vector<8x256xf32>
    %2 = arith.truncf %0 : vector<8x256xf32> to vector<8x256xbf16>
    %c0_3 = arith.constant 0 : index
    %c0_4 = arith.constant 0 : index
    %3 = vector.load %arg2[%c0_3, %c0_4] : memref<512x1536xbf16, #tpu.memory_space<vmem>>, vector<256x1536xbf16>
    %cst = arith.constant dense<0.000000e+00> : vector<8x1536xf32>
    %4 = tpu.matmul %2, %3, %cst {dimension_numbers = #tpu.dot_dimension_numbers<[1], [0], [0], [1], [0, 0, 1, 1], [], []>} : vector<8x256xbf16>, vector<256x1536xbf16>, vector<8x1536xf32> -> vector<8x1536xf32>
    %5 = arith.truncf %1 : vector<8x256xf32> to vector<8x256xbf16>
    %c256 = arith.constant 256 : index
    %c0_5 = arith.constant 0 : index
    %6 = vector.load %arg2[%c256, %c0_5] : memref<512x1536xbf16, #tpu.memory_space<vmem>>, vector<256x1536xbf16>
    %cst_6 = arith.constant dense<0.000000e+00> : vector<8x1536xf32>
    %7 = tpu.matmul %5, %6, %cst_6 {dimension_numbers = #tpu.dot_dimension_numbers<[1], [0], [0], [1], [0, 0, 1, 1], [], []>} : vector<8x256xbf16>, vector<256x1536xbf16>, vector<8x1536xf32> -> vector<8x1536xf32>
    %8 = arith.addf %4, %7 : vector<8x1536xf32>
    %c0_7 = arith.constant 0 : index
    %c0_8 = arith.constant 0 : index
    %9 = vector.load %arg3[%c0_7, %c0_8] : memref<8x1024xf32, #tpu.memory_space<vmem>>, vector<1x1024xf32>
    %c1 = arith.constant 1 : index
    %c0_9 = arith.constant 0 : index
    %10 = vector.load %arg3[%c1, %c0_9] : memref<8x1024xf32, #tpu.memory_space<vmem>>, vector<1x1024xf32>
    %c2 = arith.constant 2 : index
    %c0_10 = arith.constant 0 : index
    %11 = vector.load %arg3[%c2, %c0_10] : memref<8x1024xf32, #tpu.memory_space<vmem>>, vector<1x1024xf32>
    %c3 = arith.constant 3 : index
    %c0_11 = arith.constant 0 : index
    %12 = vector.load %arg3[%c3, %c0_11] : memref<8x1024xf32, #tpu.memory_space<vmem>>, vector<1x1024xf32>
    %c4 = arith.constant 4 : index
    %c0_12 = arith.constant 0 : index
    %13 = vector.load %arg3[%c4, %c0_12] : memref<8x1024xf32, #tpu.memory_space<vmem>>, vector<1x512xf32>
    %c5 = arith.constant 5 : index
    %c0_13 = arith.constant 0 : index
    %14 = vector.load %arg3[%c5, %c0_13] : memref<8x1024xf32, #tpu.memory_space<vmem>>, vector<1x512xf32>
    %c6 = arith.constant 6 : index
    %c0_14 = arith.constant 0 : index
    %15 = vector.load %arg3[%c6, %c0_14] : memref<8x1024xf32, #tpu.memory_space<vmem>>, vector<1x512xf32>
    %c7 = arith.constant 7 : index
    %c0_15 = arith.constant 0 : index
    %16 = vector.load %arg3[%c7, %c0_15] : memref<8x1024xf32, #tpu.memory_space<vmem>>, vector<1x1xf32>
    %17 = vector.extract_strided_slice %8 {offsets = [0, 0], sizes = [8, 1024], strides = [1, 1]} : vector<8x1536xf32> to vector<8x1024xf32>
    %18 = vector.broadcast %9 : vector<1x1024xf32> to vector<8x1024xf32>
    %19 = arith.addf %17, %18 : vector<8x1024xf32>
    %cst_16 = arith.constant dense<0.000000e+00> : vector<1024xf32>
    %20 = vector.multi_reduction <add>, %19, %cst_16 [0] : vector<8x1024xf32> to vector<1024xf32>
    %21 = vector.shape_cast %20 : vector<1024xf32> to vector<1x1024xf32>
    %cst_17 = arith.constant 8.000000e+00 : f32
    %22 = vector.broadcast %cst_17 : f32 to vector<1x1024xf32>
    %23 = arith.divf %21, %22 : vector<1x1024xf32>
    %24 = vector.broadcast %23 : vector<1x1024xf32> to vector<8x1024xf32>
    %25 = arith.subf %19, %24 : vector<8x1024xf32>
    %26 = arith.mulf %25, %25 : vector<8x1024xf32>
    %cst_18 = arith.constant dense<0.000000e+00> : vector<1024xf32>
    %27 = vector.multi_reduction <add>, %26, %cst_18 [0] : vector<8x1024xf32> to vector<1024xf32>
    %28 = vector.shape_cast %27 : vector<1024xf32> to vector<1x1024xf32>
    %cst_19 = arith.constant 8.000000e+00 : f32
    %29 = vector.broadcast %cst_19 : f32 to vector<1x1024xf32>
    %30 = arith.divf %28, %29 : vector<1x1024xf32>
    %31 = vector.broadcast %23 : vector<1x1024xf32> to vector<8x1024xf32>
    %32 = arith.subf %19, %31 : vector<8x1024xf32>
    %cst_20 = arith.constant 9.99999974E-6 : f32
    %33 = vector.broadcast %cst_20 : f32 to vector<1x1024xf32>
    %34 = arith.addf %30, %33 : vector<1x1024xf32>
    %35 = math.rsqrt %34 : vector<1x1024xf32>
    %36 = vector.broadcast %35 : vector<1x1024xf32> to vector<8x1024xf32>
    %37 = arith.mulf %32, %36 : vector<8x1024xf32>
    %38 = vector.broadcast %10 : vector<1x1024xf32> to vector<8x1024xf32>
    %39 = arith.mulf %37, %38 : vector<8x1024xf32>
    %40 = vector.broadcast %11 : vector<1x1024xf32> to vector<8x1024xf32>
    %41 = arith.addf %39, %40 : vector<8x1024xf32>
    %cst_21 = arith.constant 0.000000e+00 : f32
    %42 = vector.broadcast %cst_21 : f32 to vector<8x1024xf32>
    %43 = arith.maximumf %41, %42 : vector<8x1024xf32>
    %44 = vector.broadcast %12 : vector<1x1024xf32> to vector<8x1024xf32>
    %45 = arith.mulf %43, %44 : vector<8x1024xf32>
    %cst_22 = arith.constant dense<0.000000e+00> : vector<8xf32>
    %46 = vector.multi_reduction <add>, %45, %cst_22 [1] : vector<8x1024xf32> to vector<8xf32>
    %47 = vector.shape_cast %46 : vector<8xf32> to vector<8x1xf32>
    %48 = vector.broadcast %16 : vector<1x1xf32> to vector<8x1xf32>
    %49 = arith.addf %47, %48 : vector<8x1xf32>
    %cst_23 = arith.constant 0.000000e+00 : f32
    %50 = vector.broadcast %cst_23 : f32 to vector<8x1xf32>
    %51 = arith.subf %50, %49 : vector<8x1xf32>
    %52 = math.exp %51 : vector<8x1xf32>
    %cst_24 = arith.constant 1.000000e+00 : f32
    %53 = vector.broadcast %cst_24 : f32 to vector<8x1xf32>
    %54 = arith.addf %53, %52 : vector<8x1xf32>
    %55 = tpu.reciprocal %54 {approx = true} : vector<8x1xf32> -> vector<8x1xf32>
    %cst_25 = arith.constant 1.000000e+00 : f32
    %56 = vector.broadcast %cst_25 : f32 to vector<8x1xf32>
    %57 = arith.subf %56, %55 : vector<8x1xf32>
    %58 = vector.extract_strided_slice %8 {offsets = [0, 1024], sizes = [8, 512], strides = [1, 1]} : vector<8x1536xf32> to vector<8x512xf32>
    %59 = vector.broadcast %13 : vector<1x512xf32> to vector<8x512xf32>
    %60 = arith.addf %58, %59 : vector<8x512xf32>
    %cst_26 = arith.constant dense<0.000000e+00> : vector<512xf32>
    %61 = vector.multi_reduction <add>, %60, %cst_26 [0] : vector<8x512xf32> to vector<512xf32>
    %62 = vector.shape_cast %61 : vector<512xf32> to vector<1x512xf32>
    %cst_27 = arith.constant 8.000000e+00 : f32
    %63 = vector.broadcast %cst_27 : f32 to vector<1x512xf32>
    %64 = arith.divf %62, %63 : vector<1x512xf32>
    %65 = vector.broadcast %64 : vector<1x512xf32> to vector<8x512xf32>
    %66 = arith.subf %60, %65 : vector<8x512xf32>
    %67 = arith.mulf %66, %66 : vector<8x512xf32>
    %cst_28 = arith.constant dense<0.000000e+00> : vector<512xf32>
    %68 = vector.multi_reduction <add>, %67, %cst_28 [0] : vector<8x512xf32> to vector<512xf32>
    %69 = vector.shape_cast %68 : vector<512xf32> to vector<1x512xf32>
    %cst_29 = arith.constant 8.000000e+00 : f32
    %70 = vector.broadcast %cst_29 : f32 to vector<1x512xf32>
    %71 = arith.divf %69, %70 : vector<1x512xf32>
    %72 = vector.broadcast %64 : vector<1x512xf32> to vector<8x512xf32>
    %73 = arith.subf %60, %72 : vector<8x512xf32>
    %cst_30 = arith.constant 9.99999974E-6 : f32
    %74 = vector.broadcast %cst_30 : f32 to vector<1x512xf32>
    %75 = arith.addf %71, %74 : vector<1x512xf32>
    %76 = math.rsqrt %75 : vector<1x512xf32>
    %77 = vector.broadcast %76 : vector<1x512xf32> to vector<8x512xf32>
    %78 = arith.mulf %73, %77 : vector<8x512xf32>
    %79 = vector.broadcast %14 : vector<1x512xf32> to vector<8x512xf32>
    %80 = arith.mulf %78, %79 : vector<8x512xf32>
    %81 = vector.broadcast %15 : vector<1x512xf32> to vector<8x512xf32>
    %82 = arith.addf %80, %81 : vector<8x512xf32>
    %83 = vector.broadcast %55 : vector<8x1xf32> to vector<8x256xf32>
    %84 = arith.mulf %0, %83 : vector<8x256xf32>
    %85 = vector.extract_strided_slice %82 {offsets = [0, 0], sizes = [8, 256], strides = [1, 1]} : vector<8x512xf32> to vector<8x256xf32>
    %86 = arith.addf %84, %85 : vector<8x256xf32>
    %cst_31 = arith.constant 0.000000e+00 : f32
    %87 = vector.broadcast %cst_31 : f32 to vector<8x256xf32>
    %88 = arith.maximumf %86, %87 : vector<8x256xf32>
    %c0_32 = arith.constant 0 : index
    %c0_33 = arith.constant 0 : index
    %89 = vector.load %arg4[%c0_32, %c0_33] : memref<8x512xf32, #tpu.memory_space<vmem>>, vector<8x256xf32>
    tpu.vector_store %arg4[%c0_32, %c0_33], %88 {strides = array<i32>} : memref<8x512xf32, #tpu.memory_space<vmem>>, vector<8x256xf32>,
    %90 = vector.broadcast %57 : vector<8x1xf32> to vector<8x256xf32>
    %91 = arith.mulf %1, %90 : vector<8x256xf32>
    %92 = vector.extract_strided_slice %82 {offsets = [0, 256], sizes = [8, 256], strides = [1, 1]} : vector<8x512xf32> to vector<8x256xf32>
    %93 = arith.addf %91, %92 : vector<8x256xf32>
    %cst_34 = arith.constant 0.000000e+00 : f32
    %94 = vector.broadcast %cst_34 : f32 to vector<8x256xf32>
    %95 = arith.maximumf %93, %94 : vector<8x256xf32>
    %c0_35 = arith.constant 0 : index
    %c256_36 = arith.constant 256 : index
    %96 = vector.load %arg4[%c0_35, %c256_36] : memref<8x512xf32, #tpu.memory_space<vmem>>, vector<8x256xf32>
    tpu.vector_store %arg4[%c0_35, %c256_36], %95 {strides = array<i32>} : memref<8x512xf32, #tpu.memory_space<vmem>>, vector<8x256xf32>,
    return
  }
}

</mosaic_0001>

<llo_original>
// kernel: tpu_custom_call.1
$region0: #{tpu_custom_call.1}
  #allocation0 [shape = 'u32[]', space=smem, size = 0x4, offset = 0x4, fixed_abs, tag = 'smem constant byte address 0x4 - core index']
  #allocation1 [shape = 'u32[72,128]{1,0:T(1,128)}', space=vmem, size = 0x9000, scoped, tag = 'internal scratch']
  %s0 = inlined_call_operand.hbm [shape: f32[8,256], index: 0, kind: input, shape index: {}]
  %s1 = inlined_call_operand.hbm [shape: f32[8,256], index: 1, kind: input, shape index: {}]
  %s2 = inlined_call_operand.hbm [shape: bf16[512,1536], index: 2, kind: input, shape index: {}]
  %s3 = inlined_call_operand.hbm [shape: f32[8,1024], index: 3, kind: input, shape index: {}]
  %s4 = inlined_call_operand.hbm [shape: f32[8,512], index: 4, kind: output, shape index: {}]
  %s5 = sld [smem:[#allocation0]]
  $region42: #{tpu_custom_call.1} parent=0
    _
  %s7 = ssub.s32 1, %s5
  %s8 = scalar_select 0, %s7, %s5
  $region1: #{tpu_custom_call.1} parent=0
    #allocation2 [shape = 'u8[8192]{0}', space=vmem, size = 0x2000, scoped, tag = 'input window, operand 0, single buffered']
    #allocation3 [shape = 's32[1]{0}', space=sflag, size = 0x4, scoped, tag = 'scoped memory for tpu_custom_call.1']
    #allocation4 [shape = 's32[1]{0}', space=sflag, size = 0x4, scoped, tag = 'scoped memory for tpu_custom_call.1']
    #allocation5 [shape = 'u8[8192]{0}', space=vmem, size = 0x2000, scoped, tag = 'input window, operand 1, single buffered']
    #allocation6 [shape = 's32[1]{0}', space=sflag, size = 0x4, scoped, tag = 'scoped memory for tpu_custom_call.1']
    #allocation7 [shape = 'u8[1572864]{0}', space=vmem, size = 0x180000, scoped, tag = 'input window, operand 2, single buffered']
    #allocation8 [shape = 'u8[32768]{0}', space=vmem, size = 0x8000, scoped, tag = 'input window, operand 3, single buffered']
    #allocation9 [shape = 's32[1]{0}', space=sflag, size = 0x4, scoped, tag = 'scoped memory for tpu_custom_call.1']
    #allocation10 [shape = 'u8[16384]{0}', space=vmem, size = 0x4000, scoped, tag = 'output window, operand 0, single buffered']
    %9 = vsyncpa [#allocation3], 0
    %10 = vsyncpa [#allocation6], 0
    %11 = vsyncpa [#allocation9], 0
    %12 = vsyncpa [#allocation4], 0
    // Predicated region
    $region2: #{tpu_custom_call.1} parent=1 // pred_check
      _
    $region3: #{tpu_custom_call.1} parent=1 // pred_check_branch
      %14 = sbr.rel (0) target = $region5
    $region4: #{tpu_custom_call.1} parent=1 // pred_region
      %16 = vsyncadd [#allocation3], 0
      %s18 = sshll.u32 %s0, 4
      %s19 = int_to_ptr.hbm [resolvable:$true] %s18
      %s20 = sshll.u32 [#allocation2], 4
      %s21 = int_to_ptr.vmem [resolvable:$true] %s20
      %23 = dma.hbm_to_vmem [thread:$0]  %s19, 256, %s21, [#allocation3]
    $region5: #{tpu_custom_call.1} parent=1 // pred_fallthru
      _
    // Predicated region
    $region6: #{tpu_custom_call.1} parent=1 // pred_check
      _
    $region7: #{tpu_custom_call.1} parent=1 // pred_check_branch
      %25 = sbr.rel (0) target = $region9
    $region8: #{tpu_custom_call.1} parent=1 // pred_region
      %27 = vsyncadd [#allocation6], 0
      %s29 = sshll.u32 %s1, 4
      %s30 = int_to_ptr.hbm [resolvable:$true] %s29
      %s31 = sshll.u32 [#allocation5], 4
      %s32 = int_to_ptr.vmem [resolvable:$true] %s31
      %34 = dma.hbm_to_vmem [thread:$0]  %s30, 256, %s32, [#allocation6]
    $region9: #{tpu_custom_call.1} parent=1 // pred_fallthru
      _
    // Predicated region
    $region10: #{tpu_custom_call.1} parent=1 // pred_check
      _
    $region11: #{tpu_custom_call.1} parent=1 // pred_check_branch
      %36 = sbr.rel (0) target = $region13
    $region12: #{tpu_custom_call.1} parent=1 // pred_region
      %38 = vsyncadd [#allocation6], 0
      %s39 = sshll.u32 %s2, 4
      %s40 = int_to_ptr.hbm [resolvable:$true] %s39
      %s41 = sshll.u32 [#allocation7], 4
      %s42 = int_to_ptr.vmem [resolvable:$true] %s41
      %47 = dma.hbm_to_vmem [thread:$0]  %s40, 49152, %s42, [#allocation6], 768, 768, 48
    $region13: #{tpu_custom_call.1} parent=1 // pred_fallthru
      _
    // Predicated region
    $region14: #{tpu_custom_call.1} parent=1 // pred_check
      _
    $region15: #{tpu_custom_call.1} parent=1 // pred_check_branch
      %49 = sbr.rel (0) target = $region17
    $region16: #{tpu_custom_call.1} parent=1 // pred_region
      %51 = vsyncadd [#allocation9], 0
      %s53 = sshll.u32 %s3, 4
      %s54 = int_to_ptr.hbm [resolvable:$true] %s53
      %s55 = sshll.u32 [#allocation8], 4
      %s56 = int_to_ptr.vmem [resolvable:$true] %s55
      %58 = dma.hbm_to_vmem [thread:$0]  %s54, 1024, %s56, [#allocation9]
    $region17: #{tpu_custom_call.1} parent=1 // pred_fallthru
      _
    // Predicated region
    $region18: #{tpu_custom_call.1} parent=1 // pred_check
      _
    $region19: #{tpu_custom_call.1} parent=1 // pred_check_branch
      %60 = sbr.rel (0) target = $region21
    $region20: #{tpu_custom_call.1} parent=1 // pred_region
      %62 = dma.done [#allocation3], 256
    $region21: #{tpu_custom_call.1} parent=1 // pred_fallthru
      _
    // Predicated region
    $region22: #{tpu_custom_call.1} parent=1 // pred_check
      _
    $region23: #{tpu_custom_call.1} parent=1 // pred_check_branch
      %64 = sbr.rel (0) target = $region25
    $region24: #{tpu_custom_call.1} parent=1 // pred_region
      %66 = dma.done [#allocation6], 256
    $region25: #{tpu_custom_call.1} parent=1 // pred_fallthru
      _
    // Predicated region
    $region26: #{tpu_custom_call.1} parent=1 // pred_check
      _
    $region27: #{tpu_custom_call.1} parent=1 // pred_check_branch
      %68 = sbr.rel (0) target = $region29
    $region28: #{tpu_custom_call.1} parent=1 // pred_region
      %70 = dma.done [#allocation6], 49152
    $region29: #{tpu_custom_call.1} parent=1 // pred_fallthru
      _
    // Predicated region
    $region30: #{tpu_custom_call.1} parent=1 // pred_check
      _
    $region31: #{tpu_custom_call.1} parent=1 // pred_check_branch
      %72 = sbr.rel (0) target = $region33
    $region32: #{tpu_custom_call.1} parent=1 // pred_region
      %74 = dma.done [#allocation9], 1024
    $region33: #{tpu_custom_call.1} parent=1 // pred_fallthru
      _
    %v75 = vld [vmem:[#allocation2] sm:$0xff]
    %v76 = vld [vmem:[#allocation2 + $0x8] sm:$0xff]
    %v77 = vld [vmem:[#allocation5] sm:$0xff]
    %v78 = vld [vmem:[#allocation5 + $0x8] sm:$0xff]
    %v79 = vpack.c.bf16 %v75, %v75
    %v80 = vpack.c.bf16 %v76, %v76
    %v81 = vld [vmem:[#allocation7] sm:$0xff]
    %v82 = vld [vmem:[#allocation7 + $0x8] sm:$0xff]
    %v83 = vld [vmem:[#allocation7 + $0x10] sm:$0xff]
    %v84 = vld [vmem:[#allocation7 + $0x18] sm:$0xff]
    %v85 = vld [vmem:[#allocation7 + $0x20] sm:$0xff]
    %v86 = vld [vmem:[#allocation7 + $0x28] sm:$0xff]
    %v87 = vld [vmem:[#allocation7 + $0x30] sm:$0xff]
    %v88 = vld [vmem:[#allocation7 + $0x38] sm:$0xff]
    %v89 = vld [vmem:[#allocation7 + $0x40] sm:$0xff]
    %v90 = vld [vmem:[#allocation7 + $0x48] sm:$0xff]
    %v91 = vld [vmem:[#allocation7 + $0x50] sm:$0xff]
    %v92 = vld [vmem:[#allocation7 + $0x58] sm:$0xff]
    %v93 = vld [vmem:[#allocation7 + $0x60] sm:$0xff]
    %v94 = vld [vmem:[#allocation7 + $0x68] sm:$0xff]
    %v95 = vld [vmem:[#allocation7 + $0x70] sm:$0xff]
    %v96 = vld [vmem:[#allocation7 + $0x78] sm:$0xff]
    %v97 = vld [vmem:[#allocation7 + $0x80] sm:$0xff]
    %v98 = vld [vmem:[#allocation7 + $0x88] sm:$0xff]
    %v99 = vld [vmem:[#allocation7 + $0x90] sm:$0xff]
    %v100 = vld [vmem:[#allocation7 + $0x98] sm:$0xff]
    %v101 = vld [vmem:[#allocation7 + $0xa0] sm:$0xff]
    %v102 = vld [vmem:[#allocation7 + $0xa8] sm:$0xff]
    %v103 = vld [vmem:[#allocation7 + $0xb0] sm:$0xff]
    %v104 = vld [vmem:[#allocation7 + $0xb8] sm:$0xff]
    %v105 = vld [vmem:[#allocation7 + $0xc0] sm:$0xff]
    %v106 = vld [vmem:[#allocation7 + $0xc8] sm:$0xff]
    %v107 = vld [vmem:[#allocation7 + $0xd0] sm:$0xff]
    %v108 = vld [vmem:[#allocation7 + $0xd8] sm:$0xff]
    %v109 = vld [vmem:[#allocation7 + $0xe0] sm:$0xff]
    %v110 = vld [vmem:[#allocation7 + $0xe8] sm:$0xff]
    %v111 = vld [vmem:[#allocation7 + $0xf0] sm:$0xff]
    %v112 = vld [vmem:[#allocation7 + $0xf8] sm:$0xff]
    %v113 = vld [vmem:[#allocation7 + $0x100] sm:$0xff]
    %v114 = vld [vmem:[#allocation7 + $0x108] sm:$0xff]
    %v115 = vld [vmem:[#allocation7 + $0x110] sm:$0xff]
    %v116 = vld [vmem:[#allocation7 + $0x118] sm:$0xff]
    %v117 = vld [vmem:[#allocation7 + $0x120] sm:$0xff]
    %v118 = vld [vmem:[#allocation7 + $0x128] sm:$0xff]
    %v119 = vld [vmem:[#allocation7 + $0x130] sm:$0xff]
    %v120 = vld [vmem:[#allocation7 + $0x138] sm:$0xff]
    %v121 = vld [vmem:[#allocation7 + $0x140] sm:$0xff]
    %v122 = vld [vmem:[#allocation7 + $0x148] sm:$0xff]
    %v123 = vld [vmem:[#allocation7 + $0x150] sm:$0xff]
    %v124 = vld [vmem:[#allocation7 + $0x158] sm:$0xff]
    %v125 = vld [vmem:[#allocation7 + $0x160] sm:$0xff]
    %v126 = vld [vmem:[#allocation7 + $0x168] sm:$0xff]
    %v127 = vld [vmem:[#allocation7 + $0x170] sm:$0xff]
    %v128 = vld [vmem:[#allocation7 + $0x178] sm:$0xff]
    %v129 = vld [vmem:[#allocation7 + $0x180] sm:$0xff]
    %v130 = vld [vmem:[#allocation7 + $0x188] sm:$0xff]
    %v131 = vld [vmem:[#allocation7 + $0x190] sm:$0xff]
    %v132 = vld [vmem:[#allocation7 + $0x198] sm:$0xff]
    %v133 = vld [vmem:[#allocation7 + $0x1a0] sm:$0xff]
    %v134 = vld [vmem:[#allocation7 + $0x1a8] sm:$0xff]
    %v135 = vld [vmem:[#allocation7 + $0x1b0] sm:$0xff]
    %v136 = vld [vmem:[#allocation7 + $0x1b8] sm:$0xff]
    %v137 = vld [vmem:[#allocation7 + $0x1c0] sm:$0xff]
    %v138 = vld [vmem:[#allocation7 + $0x1c8] sm:$0xff]
    %v139 = vld [vmem:[#allocation7 + $0x1d0] sm:$0xff]
    %v140 = vld [vmem:[#allocation7 + $0x1d8] sm:$0xff]
    %v141 = vld [vmem:[#allocation7 + $0x1e0] sm:$0xff]
    %v142 = vld [vmem:[#allocation7 + $0x1e8] sm:$0xff]
    %v143 = vld [vmem:[#allocation7 + $0x1f0] sm:$0xff]
    %v144 = vld [vmem:[#allocation7 + $0x1f8] sm:$0xff]
    %v145 = vld [vmem:[#allocation7 + $0x200] sm:$0xff]
    %v146 = vld [vmem:[#allocation7 + $0x208] sm:$0xff]
    %v147 = vld [vmem:[#allocation7 + $0x210] sm:$0xff]
    %v148 = vld [vmem:[#allocation7 + $0x218] sm:$0xff]
    %v149 = vld [vmem:[#allocation7 + $0x220] sm:$0xff]
    %v150 = vld [vmem:[#allocation7 + $0x228] sm:$0xff]
    %v151 = vld [vmem:[#allocation7 + $0x230] sm:$0xff]
    %v152 = vld [vmem:[#allocation7 + $0x238] sm:$0xff]
    %v153 = vld [vmem:[#allocation7 + $0x240] sm:$0xff]
    %v154 = vld [vmem:[#allocation7 + $0x248] sm:$0xff]
    %v155 = vld [vmem:[#allocation7 + $0x250] sm:$0xff]
    %v156 = vld [vmem:[#allocation7 + $0x258] sm:$0xff]
    %v157 = vld [vmem:[#allocation7 + $0x260] sm:$0xff]
    %v158 = vld [vmem:[#allocation7 + $0x268] sm:$0xff]
    %v159 = vld [vmem:[#allocation7 + $0x270] sm:$0xff]
    %v160 = vld [vmem:[#allocation7 + $0x278] sm:$0xff]
    %v161 = vld [vmem:[#allocation7 + $0x280] sm:$0xff]
    %v162 = vld [vmem:[#allocation7 + $0x288] sm:$0xff]
    %v163 = vld [vmem:[#allocation7 + $0x290] sm:$0xff]
    %v164 = vld [vmem:[#allocation7 + $0x298] sm:$0xff]
    %v165 = vld [vmem:[#allocation7 + $0x2a0] sm:$0xff]
    %v166 = vld [vmem:[#allocation7 + $0x2a8] sm:$0xff]
    %v167 = vld [vmem:[#allocation7 + $0x2b0] sm:$0xff]
    %v168 = vld [vmem:[#allocation7 + $0x2b8] sm:$0xff]
    %v169 = vld [vmem:[#allocation7 + $0x2c0] sm:$0xff]
    %v170 = vld [vmem:[#allocation7 + $0x2c8] sm:$0xff]
    %v171 = vld [vmem:[#allocation7 + $0x2d0] sm:$0xff]
    %v172 = vld [vmem:[#allocation7 + $0x2d8] sm:$0xff]
    %v173 = vld [vmem:[#allocation7 + $0x2e0] sm:$0xff]
    %v174 = vld [vmem:[#allocation7 + $0x2e8] sm:$0xff]
    %v175 = vld [vmem:[#allocation7 + $0x2f0] sm:$0xff]
    %v176 = vld [vmem:[#allocation7 + $0x2f8] sm:$0xff]
    %v177 = vld [vmem:[#allocation7 + $0x300] sm:$0xff]
    %v178 = vld [vmem:[#allocation7 + $0x308] sm:$0xff]
    %v179 = vld [vmem:[#allocation7 + $0x310] sm:$0xff]
    %v180 = vld [vmem:[#allocation7 + $0x318] sm:$0xff]
    %v181 = vld [vmem:[#allocation7 + $0x320] sm:$0xff]
    %v182 = vld [vmem:[#allocation7 + $0x328] sm:$0xff]
    %v183 = vld [vmem:[#allocation7 + $0x330] sm:$0xff]
    %v184 = vld [vmem:[#allocation7 + $0x338] sm:$0xff]
    %v185 = vld [vmem:[#allocation7 + $0x340] sm:$0xff]
    %v186 = vld [vmem:[#allocation7 + $0x348] sm:$0xff]
    %v187 = vld [vmem:[#allocation7 + $0x350] sm:$0xff]
    %v188 = vld [vmem:[#allocation7 + $0x358] sm:$0xff]
    %v189 = vld [vmem:[#allocation7 + $0x360] sm:$0xff]
    %v190 = vld [vmem:[#allocation7 + $0x368] sm:$0xff]
    %v191 = vld [vmem:[#allocation7 + $0x370] sm:$0xff]
    %v192 = vld [vmem:[#allocation7 + $0x378] sm:$0xff]
    %v193 = vld [vmem:[#allocation7 + $0x380] sm:$0xff]
    %v194 = vld [vmem:[#allocation7 + $0x388] sm:$0xff]
    %v195 = vld [vmem:[#allocation7 + $0x390] sm:$0xff]
    %v196 = vld [vmem:[#allocation7 + $0x398] sm:$0xff]
    %v197 = vld [vmem:[#allocation7 + $0x3a0] sm:$0xff]
    %v198 = vld [vmem:[#allocation7 + $0x3a8] sm:$0xff]
    %v199 = vld [vmem:[#allocation7 + $0x3b0] sm:$0xff]
    %v200 = vld [vmem:[#allocation7 + $0x3b8] sm:$0xff]
    %v201 = vld [vmem:[#allocation7 + $0x3c0] sm:$0xff]
    %v202 = vld [vmem:[#allocation7 + $0x3c8] sm:$0xff]
    %v203 = vld [vmem:[#allocation7 + $0x3d0] sm:$0xff]
    %v204 = vld [vmem:[#allocation7 + $0x3d8] sm:$0xff]
    %v205 = vld [vmem:[#allocation7 + $0x3e0] sm:$0xff]
    %v206 = vld [vmem:[#allocation7 + $0x3e8] sm:$0xff]
    %v207 = vld [vmem:[#allocation7 + $0x3f0] sm:$0xff]
    %v208 = vld [vmem:[#allocation7 + $0x3f8] sm:$0xff]
    %v209 = vld [vmem:[#allocation7 + $0x400] sm:$0xff]
    %v210 = vld [vmem:[#allocation7 + $0x408] sm:$0xff]
    %v211 = vld [vmem:[#allocation7 + $0x410] sm:$0xff]
    %v212 = vld [vmem:[#allocation7 + $0x418] sm:$0xff]
    %v213 = vld [vmem:[#allocation7 + $0x420] sm:$0xff]
    %v214 = vld [vmem:[#allocation7 + $0x428] sm:$0xff]
    %v215 = vld [vmem:[#allocation7 + $0x430] sm:$0xff]
    %v216 = vld [vmem:[#allocation7 + $0x438] sm:$0xff]
    %v217 = vld [vmem:[#allocation7 + $0x440] sm:$0xff]
    %v218 = vld [vmem:[#allocation7 + $0x448] sm:$0xff]
    %v219 = vld [vmem:[#allocation7 + $0x450] sm:$0xff]
    %v220 = vld [vmem:[#allocation7 + $0x458] sm:$0xff]
    %v221 = vld [vmem:[#allocation7 + $0x460] sm:$0xff]
    %v222 = vld [vmem:[#allocation7 + $0x468] sm:$0xff]
    %v223 = vld [vmem:[#allocation7 + $0x470] sm:$0xff]
    %v224 = vld [vmem:[#allocation7 + $0x478] sm:$0xff]
    %v225 = vld [vmem:[#allocation7 + $0x480] sm:$0xff]
    %v226 = vld [vmem:[#allocation7 + $0x488] sm:$0xff]
    %v227 = vld [vmem:[#allocation7 + $0x490] sm:$0xff]
    %v228 = vld [vmem:[#allocation7 + $0x498] sm:$0xff]
    %v229 = vld [vmem:[#allocation7 + $0x4a0] sm:$0xff]
    %v230 = vld [vmem:[#allocation7 + $0x4a8] sm:$0xff]
    %v231 = vld [vmem:[#allocation7 + $0x4b0] sm:$0xff]
    %v232 = vld [vmem:[#allocation7 + $0x4b8] sm:$0xff]
    %v233 = vld [vmem:[#allocation7 + $0x4c0] sm:$0xff]
    %v234 = vld [vmem:[#allocation7 + $0x4c8] sm:$0xff]
    %v235 = vld [vmem:[#allocation7 + $0x4d0] sm:$0xff]
    %v236 = vld [vmem:[#allocation7 + $0x4d8] sm:$0xff]
    %v237 = vld [vmem:[#allocation7 + $0x4e0] sm:$0xff]
    %v238 = vld [vmem:[#allocation7 + $0x4e8] sm:$0xff]
    %v239 = vld [vmem:[#allocation7 + $0x4f0] sm:$0xff]
    %v240 = vld [vmem:[#allocation7 + $0x4f8] sm:$0xff]
    %v241 = vld [vmem:[#allocation7 + $0x500] sm:$0xff]
    %v242 = vld [vmem:[#allocation7 + $0x508] sm:$0xff]
    %v243 = vld [vmem:[#allocation7 + $0x510] sm:$0xff]
    %v244 = vld [vmem:[#allocation7 + $0x518] sm:$0xff]
    %v245 = vld [vmem:[#allocation7 + $0x520] sm:$0xff]
    %v246 = vld [vmem:[#allocation7 + $0x528] sm:$0xff]
    %v247 = vld [vmem:[#allocation7 + $0x530] sm:$0xff]
    %v248 = vld [vmem:[#allocation7 + $0x538] sm:$0xff]
    %v249 = vld [vmem:[#allocation7 + $0x540] sm:$0xff]
    %v250 = vld [vmem:[#allocation7 + $0x548] sm:$0xff]
    %v251 = vld [vmem:[#allocation7 + $0x550] sm:$0xff]
    %v252 = vld [vmem:[#allocation7 + $0x558] sm:$0xff]
    %v253 = vld [vmem:[#allocation7 + $0x560] sm:$0xff]
    %v254 = vld [vmem:[#allocation7 + $0x568] sm:$0xff]
    %v255 = vld [vmem:[#allocation7 + $0x570] sm:$0xff]
    %v256 = vld [vmem:[#allocation7 + $0x578] sm:$0xff]
    %v257 = vld [vmem:[#allocation7 + $0x580] sm:$0xff]
    %v258 = vld [vmem:[#allocation7 + $0x588] sm:$0xff]
    %v259 = vld [vmem:[#allocation7 + $0x590] sm:$0xff]
    %v260 = vld [vmem:[#allocation7 + $0x598] sm:$0xff]
    %v261 = vld [vmem:[#allocation7 + $0x5a0] sm:$0xff]
    %v262 = vld [vmem:[#allocation7 + $0x5a8] sm:$0xff]
    %v263 = vld [vmem:[#allocation7 + $0x5b0] sm:$0xff]
    %v264 = vld [vmem:[#allocation7 + $0x5b8] sm:$0xff]
    %v265 = vld [vmem:[#allocation7 + $0x5c0] sm:$0xff]
    %v266 = vld [vmem:[#allocation7 + $0x5c8] sm:$0xff]
    %v267 = vld [vmem:[#allocation7 + $0x5d0] sm:$0xff]
    %v268 = vld [vmem:[#allocation7 + $0x5d8] sm:$0xff]
    %v269 = vld [vmem:[#allocation7 + $0x5e0] sm:$0xff]
    %v270 = vld [vmem:[#allocation7 + $0x5e8] sm:$0xff]
    %v271 = vld [vmem:[#allocation7 + $0x5f0] sm:$0xff]
    %v272 = vld [vmem:[#allocation7 + $0x5f8] sm:$0xff]
    %v273 = vpack.c.bf16 %v77, %v77
    %v274 = vpack.c.bf16 %v78, %v78
    %v275 = vld [vmem:[#allocation7 + $0x600] sm:$0xff]
    %v276 = vld [vmem:[#allocation7 + $0x608] sm:$0xff]
    %v277 = vld [vmem:[#allocation7 + $0x610] sm:$0xff]
    %v278 = vld [vmem:[#allocation7 + $0x618] sm:$0xff]
    %v279 = vld [vmem:[#allocation7 + $0x620] sm:$0xff]
    %v280 = vld [vmem:[#allocation7 + $0x628] sm:$0xff]
    %v281 = vld [vmem:[#allocation7 + $0x630] sm:$0xff]
    %v282 = vld [vmem:[#allocation7 + $0x638] sm:$0xff]
    %v283 = vld [vmem:[#allocation7 + $0x640] sm:$0xff]
    %v284 = vld [vmem:[#allocation7 + $0x648] sm:$0xff]
    %v285 = vld [vmem:[#allocation7 + $0x650] sm:$0xff]
    %v286 = vld [vmem:[#allocation7 + $0x658] sm:$0xff]
    %v287 = vld [vmem:[#allocation7 + $0x660] sm:$0xff]
    %v288 = vld [vmem:[#allocation7 + $0x668] sm:$0xff]
    %v289 = vld [vmem:[#allocation7 + $0x670] sm:$0xff]
    %v290 = vld [vmem:[#allocation7 + $0x678] sm:$0xff]
    %v291 = vld [vmem:[#allocation7 + $0x680] sm:$0xff]
    %v292 = vld [vmem:[#allocation7 + $0x688] sm:$0xff]
    %v293 = vld [vmem:[#allocation7 + $0x690] sm:$0xff]
    %v294 = vld [vmem:[#allocation7 + $0x698] sm:$0xff]
    %v295 = vld [vmem:[#allocation7 + $0x6a0] sm:$0xff]
    %v296 = vld [vmem:[#allocation7 + $0x6a8] sm:$0xff]
    %v297 = vld [vmem:[#allocation7 + $0x6b0] sm:$0xff]
    %v298 = vld [vmem:[#allocation7 + $0x6b8] sm:$0xff]
    %v299 = vld [vmem:[#allocation7 + $0x6c0] sm:$0xff]
    %v300 = vld [vmem:[#allocation7 + $0x6c8] sm:$0xff]
    %v301 = vld [vmem:[#allocation7 + $0x6d0] sm:$0xff]
    %v302 = vld [vmem:[#allocation7 + $0x6d8] sm:$0xff]
    %v303 = vld [vmem:[#allocation7 + $0x6e0] sm:$0xff]
    %v304 = vld [vmem:[#allocation7 + $0x6e8] sm:$0xff]
    %v305 = vld [vmem:[#allocation7 + $0x6f0] sm:$0xff]
    %v306 = vld [vmem:[#allocation7 + $0x6f8] sm:$0xff]
    %v307 = vld [vmem:[#allocation7 + $0x700] sm:$0xff]
    %v308 = vld [vmem:[#allocation7 + $0x708] sm:$0xff]
    %v309 = vld [vmem:[#allocation7 + $0x710] sm:$0xff]
    %v310 = vld [vmem:[#allocation7 + $0x718] sm:$0xff]
    %v311 = vld [vmem:[#allocation7 + $0x720] sm:$0xff]
    %v312 = vld [vmem:[#allocation7 + $0x728] sm:$0xff]
    %v313 = vld [vmem:[#allocation7 + $0x730] sm:$0xff]
    %v314 = vld [vmem:[#allocation7 + $0x738] sm:$0xff]
    %v315 = vld [vmem:[#allocation7 + $0x740] sm:$0xff]
    %v316 = vld [vmem:[#allocation7 + $0x748] sm:$0xff]
    %v317 = vld [vmem:[#allocation7 + $0x750] sm:$0xff]
    %v318 = vld [vmem:[#allocation7 + $0x758] sm:$0xff]
    %v319 = vld [vmem:[#allocation7 + $0x760] sm:$0xff]
    %v320 = vld [vmem:[#allocation7 + $0x768] sm:$0xff]
    %v321 = vld [vmem:[#allocation7 + $0x770] sm:$0xff]
    %v322 = vld [vmem:[#allocation7 + $0x778] sm:$0xff]
    %v323 = vld [vmem:[#allocation7 + $0x780] sm:$0xff]
    %v324 = vld [vmem:[#allocation7 + $0x788] sm:$0xff]
    %v325 = vld [vmem:[#allocation7 + $0x790] sm:$0xff]
    %v326 = vld [vmem:[#allocation7 + $0x798] sm:$0xff]
    %v327 = vld [vmem:[#allocation7 + $0x7a0] sm:$0xff]
    %v328 = vld [vmem:[#allocation7 + $0x7a8] sm:$0xff]
    %v329 = vld [vmem:[#allocation7 + $0x7b0] sm:$0xff]
    %v330 = vld [vmem:[#allocation7 + $0x7b8] sm:$0xff]
    %v331 = vld [vmem:[#allocation7 + $0x7c0] sm:$0xff]
    %v332 = vld [vmem:[#allocation7 + $0x7c8] sm:$0xff]
    %v333 = vld [vmem:[#allocation7 + $0x7d0] sm:$0xff]
    %v334 = vld [vmem:[#allocation7 + $0x7d8] sm:$0xff]
    %v335 = vld [vmem:[#allocation7 + $0x7e0] sm:$0xff]
    %v336 = vld [vmem:[#allocation7 + $0x7e8] sm:$0xff]
    %v337 = vld [vmem:[#allocation7 + $0x7f0] sm:$0xff]
    %v338 = vld [vmem:[#allocation7 + $0x7f8] sm:$0xff]
    %v339 = vld [vmem:[#allocation7 + $0x800] sm:$0xff]
    %v340 = vld [vmem:[#allocation7 + $0x808] sm:$0xff]
    %v341 = vld [vmem:[#allocation7 + $0x810] sm:$0xff]
    %v342 = vld [vmem:[#allocation7 + $0x818] sm:$0xff]
    %v343 = vld [vmem:[#allocation7 + $0x820] sm:$0xff]
    %v344 = vld [vmem:[#allocation7 + $0x828] sm:$0xff]
    %v345 = vld [vmem:[#allocation7 + $0x830] sm:$0xff]
    %v346 = vld [vmem:[#allocation7 + $0x838] sm:$0xff]
    %v347 = vld [vmem:[#allocation7 + $0x840] sm:$0xff]
    %v348 = vld [vmem:[#allocation7 + $0x848] sm:$0xff]
    %v349 = vld [vmem:[#allocation7 + $0x850] sm:$0xff]
    %v350 = vld [vmem:[#allocation7 + $0x858] sm:$0xff]
    %v351 = vld [vmem:[#allocation7 + $0x860] sm:$0xff]
    %v352 = vld [vmem:[#allocation7 + $0x868] sm:$0xff]
    %v353 = vld [vmem:[#allocation7 + $0x870] sm:$0xff]
    %v354 = vld [vmem:[#allocation7 + $0x878] sm:$0xff]
    %v355 = vld [vmem:[#allocation7 + $0x880] sm:$0xff]
    %v356 = vld [vmem:[#allocation7 + $0x888] sm:$0xff]
    %v357 = vld [vmem:[#allocation7 + $0x890] sm:$0xff]
    %v358 = vld [vmem:[#allocation7 + $0x898] sm:$0xff]
    %v359 = vld [vmem:[#allocation7 + $0x8a0] sm:$0xff]
    %v360 = vld [vmem:[#allocation7 + $0x8a8] sm:$0xff]
    %v361 = vld [vmem:[#allocation7 + $0x8b0] sm:$0xff]
    %v362 = vld [vmem:[#allocation7 + $0x8b8] sm:$0xff]
    %v363 = vld [vmem:[#allocation7 + $0x8c0] sm:$0xff]
    %v364 = vld [vmem:[#allocation7 + $0x8c8] sm:$0xff]
    %v365 = vld [vmem:[#allocation7 + $0x8d0] sm:$0xff]
    %v366 = vld [vmem:[#allocation7 + $0x8d8] sm:$0xff]
    %v367 = vld [vmem:[#allocation7 + $0x8e0] sm:$0xff]
    %v368 = vld [vmem:[#allocation7 + $0x8e8] sm:$0xff]
    %v369 = vld [vmem:[#allocation7 + $0x8f0] sm:$0xff]
    %v370 = vld [vmem:[#allocation7 + $0x8f8] sm:$0xff]
    %v371 = vld [vmem:[#allocation7 + $0x900] sm:$0xff]
    %v372 = vld [vmem:[#allocation7 + $0x908] sm:$0xff]
    %v373 = vld [vmem:[#allocation7 + $0x910] sm:$0xff]
    %v374 = vld [vmem:[#allocation7 + $0x918] sm:$0xff]
    %v375 = vld [vmem:[#allocation7 + $0x920] sm:$0xff]
    %v376 = vld [vmem:[#allocation7 + $0x928] sm:$0xff]
    %v377 = vld [vmem:[#allocation7 + $0x930] sm:$0xff]
    %v378 = vld [vmem:[#allocation7 + $0x938] sm:$0xff]
    %v379 = vld [vmem:[#allocation7 + $0x940] sm:$0xff]
    %v380 = vld [vmem:[#allocation7 + $0x948] sm:$0xff]
    %v381 = vld [vmem:[#allocation7 + $0x950] sm:$0xff]
    %v382 = vld [vmem:[#allocation7 + $0x958] sm:$0xff]
    %v383 = vld [vmem:[#allocation7 + $0x960] sm:$0xff]
    %v384 = vld [vmem:[#allocation7 + $0x968] sm:$0xff]
    %v385 = vld [vmem:[#allocation7 + $0x970] sm:$0xff]
    %v386 = vld [vmem:[#allocation7 + $0x978] sm:$0xff]
    %v387 = vld [vmem:[#allocation7 + $0x980] sm:$0xff]
    %v388 = vld [vmem:[#allocation7 + $0x988] sm:$0xff]
    %v389 = vld [vmem:[#allocation7 + $0x990] sm:$0xff]
    %v390 = vld [vmem:[#allocation7 + $0x998] sm:$0xff]
    %v391 = vld [vmem:[#allocation7 + $0x9a0] sm:$0xff]
    %v392 = vld [vmem:[#allocation7 + $0x9a8] sm:$0xff]
    %v393 = vld [vmem:[#allocation7 + $0x9b0] sm:$0xff]
    %v394 = vld [vmem:[#allocation7 + $0x9b8] sm:$0xff]
    %v395 = vld [vmem:[#allocation7 + $0x9c0] sm:$0xff]
    %v396 = vld [vmem:[#allocation7 + $0x9c8] sm:$0xff]
    %v397 = vld [vmem:[#allocation7 + $0x9d0] sm:$0xff]
    %v398 = vld [vmem:[#allocation7 + $0x9d8] sm:$0xff]
    %v399 = vld [vmem:[#allocation7 + $0x9e0] sm:$0xff]
    %v400 = vld [vmem:[#allocation7 + $0x9e8] sm:$0xff]
    %v401 = vld [vmem:[#allocation7 + $0x9f0] sm:$0xff]
    %v402 = vld [vmem:[#allocation7 + $0x9f8] sm:$0xff]
    %v403 = vld [vmem:[#allocation7 + $0xa00] sm:$0xff]
    %v404 = vld [vmem:[#allocation7 + $0xa08] sm:$0xff]
    %v405 = vld [vmem:[#allocation7 + $0xa10] sm:$0xff]
    %v406 = vld [vmem:[#allocation7 + $0xa18] sm:$0xff]
    %v407 = vld [vmem:[#allocation7 + $0xa20] sm:$0xff]
    %v408 = vld [vmem:[#allocation7 + $0xa28] sm:$0xff]
    %v409 = vld [vmem:[#allocation7 + $0xa30] sm:$0xff]
    %v410 = vld [vmem:[#allocation7 + $0xa38] sm:$0xff]
    %v411 = vld [vmem:[#allocation7 + $0xa40] sm:$0xff]
    %v412 = vld [vmem:[#allocation7 + $0xa48] sm:$0xff]
    %v413 = vld [vmem:[#allocation7 + $0xa50] sm:$0xff]
    %v414 = vld [vmem:[#allocation7 + $0xa58] sm:$0xff]
    %v415 = vld [vmem:[#allocation7 + $0xa60] sm:$0xff]
    %v416 = vld [vmem:[#allocation7 + $0xa68] sm:$0xff]
    %v417 = vld [vmem:[#allocation7 + $0xa70] sm:$0xff]
    %v418 = vld [vmem:[#allocation7 + $0xa78] sm:$0xff]
    %v419 = vld [vmem:[#allocation7 + $0xa80] sm:$0xff]
    %v420 = vld [vmem:[#allocation7 + $0xa88] sm:$0xff]
    %v421 = vld [vmem:[#allocation7 + $0xa90] sm:$0xff]
    %v422 = vld [vmem:[#allocation7 + $0xa98] sm:$0xff]
    %v423 = vld [vmem:[#allocation7 + $0xaa0] sm:$0xff]
    %v424 = vld [vmem:[#allocation7 + $0xaa8] sm:$0xff]
    %v425 = vld [vmem:[#allocation7 + $0xab0] sm:$0xff]
    %v426 = vld [vmem:[#allocation7 + $0xab8] sm:$0xff]
    %v427 = vld [vmem:[#allocation7 + $0xac0] sm:$0xff]
    %v428 = vld [vmem:[#allocation7 + $0xac8] sm:$0xff]
    %v429 = vld [vmem:[#allocation7 + $0xad0] sm:$0xff]
    %v430 = vld [vmem:[#allocation7 + $0xad8] sm:$0xff]
    %v431 = vld [vmem:[#allocation7 + $0xae0] sm:$0xff]
    %v432 = vld [vmem:[#allocation7 + $0xae8] sm:$0xff]
    %v433 = vld [vmem:[#allocation7 + $0xaf0] sm:$0xff]
    %v434 = vld [vmem:[#allocation7 + $0xaf8] sm:$0xff]
    %v435 = vld [vmem:[#allocation7 + $0xb00] sm:$0xff]
    %v436 = vld [vmem:[#allocation7 + $0xb08] sm:$0xff]
    %v437 = vld [vmem:[#allocation7 + $0xb10] sm:$0xff]
    %v438 = vld [vmem:[#allocation7 + $0xb18] sm:$0xff]
    %v439 = vld [vmem:[#allocation7 + $0xb20] sm:$0xff]
    %v440 = vld [vmem:[#allocation7 + $0xb28] sm:$0xff]
    %v441 = vld [vmem:[#allocation7 + $0xb30] sm:$0xff]
    %v442 = vld [vmem:[#allocation7 + $0xb38] sm:$0xff]
    %v443 = vld [vmem:[#allocation7 + $0xb40] sm:$0xff]
    %v444 = vld [vmem:[#allocation7 + $0xb48] sm:$0xff]
    %v445 = vld [vmem:[#allocation7 + $0xb50] sm:$0xff]
    %v446 = vld [vmem:[#allocation7 + $0xb58] sm:$0xff]
    %v447 = vld [vmem:[#allocation7 + $0xb60] sm:$0xff]
    %v448 = vld [vmem:[#allocation7 + $0xb68] sm:$0xff]
    %v449 = vld [vmem:[#allocation7 + $0xb70] sm:$0xff]
    %v450 = vld [vmem:[#allocation7 + $0xb78] sm:$0xff]
    %v451 = vld [vmem:[#allocation7 + $0xb80] sm:$0xff]
    %v452 = vld [vmem:[#allocation7 + $0xb88] sm:$0xff]
    %v453 = vld [vmem:[#allocation7 + $0xb90] sm:$0xff]
    %v454 = vld [vmem:[#allocation7 + $0xb98] sm:$0xff]
    %v455 = vld [vmem:[#allocation7 + $0xba0] sm:$0xff]
    %v456 = vld [vmem:[#allocation7 + $0xba8] sm:$0xff]
    %v457 = vld [vmem:[#allocation7 + $0xbb0] sm:$0xff]
    %v458 = vld [vmem:[#allocation7 + $0xbb8] sm:$0xff]
    %v459 = vld [vmem:[#allocation7 + $0xbc0] sm:$0xff]
    %v460 = vld [vmem:[#allocation7 + $0xbc8] sm:$0xff]
    %v461 = vld [vmem:[#allocation7 + $0xbd0] sm:$0xff]
    %v462 = vld [vmem:[#allocation7 + $0xbd8] sm:$0xff]
    %v463 = vld [vmem:[#allocation7 + $0xbe0] sm:$0xff]
    %v464 = vld [vmem:[#allocation7 + $0xbe8] sm:$0xff]
    %v465 = vld [vmem:[#allocation7 + $0xbf0] sm:$0xff]
    %v466 = vld [vmem:[#allocation7 + $0xbf8] sm:$0xff]
    %v659 = vunpack.c.l.b16 %v275
    %v660 = vunpack.c.h.b16 %v275
    %v661 = vunpack.c.l.b16 %v276
    %v662 = vunpack.c.h.b16 %v276
    %v663 = vunpack.c.l.b16 %v277
    %v664 = vunpack.c.h.b16 %v277
    %v665 = vunpack.c.l.b16 %v278
    %v666 = vunpack.c.h.b16 %v278
    %v667 = vunpack.c.l.b16 %v279
    %v668 = vunpack.c.h.b16 %v279
    %v669 = vunpack.c.l.b16 %v280
    %v670 = vunpack.c.h.b16 %v280
    %v671 = vunpack.c.l.b16 %v281
    %v672 = vunpack.c.h.b16 %v281
    %v673 = vunpack.c.l.b16 %v282
    %v674 = vunpack.c.h.b16 %v282
    %v675 = vunpack.c.l.b16 %v283
    %v676 = vunpack.c.h.b16 %v283
    %v677 = vunpack.c.l.b16 %v284
    %v678 = vunpack.c.h.b16 %v284
    %v679 = vunpack.c.l.b16 %v285
    %v680 = vunpack.c.h.b16 %v285
    %v681 = vunpack.c.l.b16 %v286
    %v682 = vunpack.c.h.b16 %v286
    %v683 = vunpack.c.l.b16 %v287
    %v684 = vunpack.c.h.b16 %v287
    %v685 = vunpack.c.l.b16 %v288
    %v686 = vunpack.c.h.b16 %v288
    %v687 = vunpack.c.l.b16 %v289
    %v688 = vunpack.c.h.b16 %v289
    %v689 = vunpack.c.l.b16 %v290
    %v690 = vunpack.c.h.b16 %v290
    %v691 = vunpack.c.l.b16 %v291
    %v692 = vunpack.c.h.b16 %v291
    %v693 = vunpack.c.l.b16 %v292
    %v694 = vunpack.c.h.b16 %v292
    %v695 = vunpack.c.l.b16 %v293
    %v696 = vunpack.c.h.b16 %v293
    %v697 = vunpack.c.l.b16 %v294
    %v698 = vunpack.c.h.b16 %v294
    %v699 = vunpack.c.l.b16 %v295
    %v700 = vunpack.c.h.b16 %v295
    %v701 = vunpack.c.l.b16 %v296
    %v702 = vunpack.c.h.b16 %v296
    %v703 = vunpack.c.l.b16 %v297
    %v704 = vunpack.c.h.b16 %v297
    %v705 = vunpack.c.l.b16 %v298
    %v706 = vunpack.c.h.b16 %v298
    %v707 = vunpack.c.l.b16 %v299
    %v708 = vunpack.c.h.b16 %v299
    %v709 = vunpack.c.l.b16 %v300
    %v710 = vunpack.c.h.b16 %v300
    %v711 = vunpack.c.l.b16 %v301
    %v712 = vunpack.c.h.b16 %v301
    %v713 = vunpack.c.l.b16 %v302
    %v714 = vunpack.c.h.b16 %v302
    %v715 = vunpack.c.l.b16 %v303
    %v716 = vunpack.c.h.b16 %v303
    %v717 = vunpack.c.l.b16 %v304
    %v718 = vunpack.c.h.b16 %v304
    %v719 = vunpack.c.l.b16 %v305
    %v720 = vunpack.c.h.b16 %v305
    %v721 = vunpack.c.l.b16 %v306
    %v722 = vunpack.c.h.b16 %v306
    %v723 = vunpack.c.l.b16 %v307
    %v724 = vunpack.c.h.b16 %v307
    %v725 = vunpack.c.l.b16 %v308
    %v726 = vunpack.c.h.b16 %v308
    %v727 = vunpack.c.l.b16 %v309
    %v728 = vunpack.c.h.b16 %v309
    %v729 = vunpack.c.l.b16 %v310
    %v730 = vunpack.c.h.b16 %v310
    %v731 = vunpack.c.l.b16 %v311
    %v732 = vunpack.c.h.b16 %v311
    %v733 = vunpack.c.l.b16 %v312
    %v734 = vunpack.c.h.b16 %v312
    %v735 = vunpack.c.l.b16 %v313
    %v736 = vunpack.c.h.b16 %v313
    %v737 = vunpack.c.l.b16 %v314
    %v738 = vunpack.c.h.b16 %v314
    %v739 = vunpack.c.l.b16 %v315
    %v740 = vunpack.c.h.b16 %v315
    %v741 = vunpack.c.l.b16 %v316
    %v742 = vunpack.c.h.b16 %v316
    %v743 = vunpack.c.l.b16 %v317
    %v744 = vunpack.c.h.b16 %v317
    %v745 = vunpack.c.l.b16 %v318
    %v746 = vunpack.c.h.b16 %v318
    %v747 = vunpack.c.l.b16 %v319
    %v748 = vunpack.c.h.b16 %v319
    %v749 = vunpack.c.l.b16 %v320
    %v750 = vunpack.c.h.b16 %v320
    %v751 = vunpack.c.l.b16 %v321
    %v752 = vunpack.c.h.b16 %v321
    %v753 = vunpack.c.l.b16 %v322
    %v754 = vunpack.c.h.b16 %v322
    %v755 = vunpack.c.l.b16 %v323
    %v756 = vunpack.c.h.b16 %v323
    %v757 = vunpack.c.l.b16 %v324
    %v758 = vunpack.c.h.b16 %v324
    %v759 = vunpack.c.l.b16 %v325
    %v760 = vunpack.c.h.b16 %v325
    %v761 = vunpack.c.l.b16 %v326
    %v762 = vunpack.c.h.b16 %v326
    %v763 = vunpack.c.l.b16 %v327
    %v764 = vunpack.c.h.b16 %v327
    %v765 = vunpack.c.l.b16 %v328
    %v766 = vunpack.c.h.b16 %v328
    %v767 = vunpack.c.l.b16 %v329
    %v768 = vunpack.c.h.b16 %v329
    %v769 = vunpack.c.l.b16 %v330
    %v770 = vunpack.c.h.b16 %v330
    %v771 = vunpack.c.l.b16 %v331
    %v772 = vunpack.c.h.b16 %v331
    %v773 = vunpack.c.l.b16 %v332
    %v774 = vunpack.c.h.b16 %v332
    %v775 = vunpack.c.l.b16 %v333
    %v776 = vunpack.c.h.b16 %v333
    %v777 = vunpack.c.l.b16 %v334
    %v778 = vunpack.c.h.b16 %v334
    %v779 = vunpack.c.l.b16 %v335
    %v780 = vunpack.c.h.b16 %v335
    %v781 = vunpack.c.l.b16 %v336
    %v782 = vunpack.c.h.b16 %v336
    %v783 = vunpack.c.l.b16 %v337
    %v784 = vunpack.c.h.b16 %v337
    %v785 = vunpack.c.l.b16 %v338
    %v786 = vunpack.c.h.b16 %v338
    %v787 = vunpack.c.l.b16 %v339
    %v788 = vunpack.c.h.b16 %v339
    %v789 = vunpack.c.l.b16 %v340
    %v790 = vunpack.c.h.b16 %v340
    %v791 = vunpack.c.l.b16 %v341
    %v792 = vunpack.c.h.b16 %v341
    %v793 = vunpack.c.l.b16 %v342
    %v794 = vunpack.c.h.b16 %v342
    %v795 = vunpack.c.l.b16 %v343
    %v796 = vunpack.c.h.b16 %v343
    %v797 = vunpack.c.l.b16 %v344
    %v798 = vunpack.c.h.b16 %v344
    %v799 = vunpack.c.l.b16 %v345
    %v800 = vunpack.c.h.b16 %v345
    %v801 = vunpack.c.l.b16 %v346
    %v802 = vunpack.c.h.b16 %v346
    %v803 = vunpack.c.l.b16 %v347
    %v804 = vunpack.c.h.b16 %v347
    %v805 = vunpack.c.l.b16 %v348
    %v806 = vunpack.c.h.b16 %v348
    %v807 = vunpack.c.l.b16 %v349
    %v808 = vunpack.c.h.b16 %v349
    %v809 = vunpack.c.l.b16 %v350
    %v810 = vunpack.c.h.b16 %v350
    %v811 = vunpack.c.l.b16 %v351
    %v812 = vunpack.c.h.b16 %v351
    %v813 = vunpack.c.l.b16 %v352
    %v814 = vunpack.c.h.b16 %v352
    %v815 = vunpack.c.l.b16 %v353
    %v816 = vunpack.c.h.b16 %v353
    %v817 = vunpack.c.l.b16 %v354
    %v818 = vunpack.c.h.b16 %v354
    %v819 = vunpack.c.l.b16 %v355
    %v820 = vunpack.c.h.b16 %v355
    %v821 = vunpack.c.l.b16 %v356
    %v822 = vunpack.c.h.b16 %v356
    %v823 = vunpack.c.l.b16 %v357
    %v824 = vunpack.c.h.b16 %v357
    %v825 = vunpack.c.l.b16 %v358
    %v826 = vunpack.c.h.b16 %v358
    %v827 = vunpack.c.l.b16 %v359
    %v828 = vunpack.c.h.b16 %v359
    %v829 = vunpack.c.l.b16 %v360
    %v830 = vunpack.c.h.b16 %v360
    %v831 = vunpack.c.l.b16 %v361
    %v832 = vunpack.c.h.b16 %v361
    %v833 = vunpack.c.l.b16 %v362
    %v834 = vunpack.c.h.b16 %v362
    %v835 = vunpack.c.l.b16 %v363
    %v836 = vunpack.c.h.b16 %v363
    %v837 = vunpack.c.l.b16 %v364
    %v838 = vunpack.c.h.b16 %v364
    %v839 = vunpack.c.l.b16 %v365
    %v840 = vunpack.c.h.b16 %v365
    %v841 = vunpack.c.l.b16 %v366
    %v842 = vunpack.c.h.b16 %v366
    %v843 = vunpack.c.l.b16 %v367
    %v844 = vunpack.c.h.b16 %v367
    %v845 = vunpack.c.l.b16 %v368
    %v846 = vunpack.c.h.b16 %v368
    %v847 = vunpack.c.l.b16 %v369
    %v848 = vunpack.c.h.b16 %v369
    %v849 = vunpack.c.l.b16 %v370
    %v850 = vunpack.c.h.b16 %v370
    %v851 = vunpack.c.l.b16 %v371
    %v852 = vunpack.c.h.b16 %v371
    %v853 = vunpack.c.l.b16 %v372
    %v854 = vunpack.c.h.b16 %v372
    %v855 = vunpack.c.l.b16 %v373
    %v856 = vunpack.c.h.b16 %v373
    %v857 = vunpack.c.l.b16 %v374
    %v858 = vunpack.c.h.b16 %v374
    %v859 = vunpack.c.l.b16 %v375
    %v860 = vunpack.c.h.b16 %v375
    %v861 = vunpack.c.l.b16 %v376
    %v862 = vunpack.c.h.b16 %v376
    %v863 = vunpack.c.l.b16 %v377
    %v864 = vunpack.c.h.b16 %v377
    %v865 = vunpack.c.l.b16 %v378
    %v866 = vunpack.c.h.b16 %v378
    %v867 = vunpack.c.l.b16 %v379
    %v868 = vunpack.c.h.b16 %v379
    %v869 = vunpack.c.l.b16 %v380
    %v870 = vunpack.c.h.b16 %v380
    %v871 = vunpack.c.l.b16 %v381
    %v872 = vunpack.c.h.b16 %v381
    %v873 = vunpack.c.l.b16 %v382
    %v874 = vunpack.c.h.b16 %v382
    %v875 = vunpack.c.l.b16 %v383
    %v876 = vunpack.c.h.b16 %v383
    %v877 = vunpack.c.l.b16 %v384
    %v878 = vunpack.c.h.b16 %v384
    %v879 = vunpack.c.l.b16 %v385
    %v880 = vunpack.c.h.b16 %v385
    %v881 = vunpack.c.l.b16 %v386
    %v882 = vunpack.c.h.b16 %v386
    %v883 = vunpack.c.l.b16 %v387
    %v884 = vunpack.c.h.b16 %v387
    %v885 = vunpack.c.l.b16 %v388
    %v886 = vunpack.c.h.b16 %v388
    %v887 = vunpack.c.l.b16 %v389
    %v888 = vunpack.c.h.b16 %v389
    %v889 = vunpack.c.l.b16 %v390
    %v890 = vunpack.c.h.b16 %v390
    %v891 = vunpack.c.l.b16 %v391
    %v892 = vunpack.c.h.b16 %v391
    %v893 = vunpack.c.l.b16 %v392
    %v894 = vunpack.c.h.b16 %v392
    %v895 = vunpack.c.l.b16 %v393
    %v896 = vunpack.c.h.b16 %v393
    %v897 = vunpack.c.l.b16 %v394
    %v898 = vunpack.c.h.b16 %v394
    %v899 = vunpack.c.l.b16 %v395
    %v900 = vunpack.c.h.b16 %v395
    %v901 = vunpack.c.l.b16 %v396
    %v902 = vunpack.c.h.b16 %v396
    %v903 = vunpack.c.l.b16 %v397
    %v904 = vunpack.c.h.b16 %v397
    %v905 = vunpack.c.l.b16 %v398
    %v906 = vunpack.c.h.b16 %v398
    %v907 = vunpack.c.l.b16 %v399
    %v908 = vunpack.c.h.b16 %v399
    %v909 = vunpack.c.l.b16 %v400
    %v910 = vunpack.c.h.b16 %v400
    %v911 = vunpack.c.l.b16 %v401
    %v912 = vunpack.c.h.b16 %v401
    %v913 = vunpack.c.l.b16 %v402
    %v914 = vunpack.c.h.b16 %v402
    %v915 = vunpack.c.l.b16 %v403
    %v916 = vunpack.c.h.b16 %v403
    %v917 = vunpack.c.l.b16 %v404
    %v918 = vunpack.c.h.b16 %v404
    %v919 = vunpack.c.l.b16 %v405
    %v920 = vunpack.c.h.b16 %v405
    %v921 = vunpack.c.l.b16 %v406
    %v922 = vunpack.c.h.b16 %v406
    %v923 = vunpack.c.l.b16 %v407
    %v924 = vunpack.c.h.b16 %v407
    %v925 = vunpack.c.l.b16 %v408
    %v926 = vunpack.c.h.b16 %v408
    %v927 = vunpack.c.l.b16 %v409
    %v928 = vunpack.c.h.b16 %v409
    %v929 = vunpack.c.l.b16 %v410
    %v930 = vunpack.c.h.b16 %v410
    %v931 = vunpack.c.l.b16 %v411
    %v932 = vunpack.c.h.b16 %v411
    %v933 = vunpack.c.l.b16 %v412
    %v934 = vunpack.c.h.b16 %v412
    %v935 = vunpack.c.l.b16 %v413
    %v936 = vunpack.c.h.b16 %v413
    %v937 = vunpack.c.l.b16 %v414
    %v938 = vunpack.c.h.b16 %v414
    %v939 = vunpack.c.l.b16 %v415
    %v940 = vunpack.c.h.b16 %v415
    %v941 = vunpack.c.l.b16 %v416
    %v942 = vunpack.c.h.b16 %v416
    %v943 = vunpack.c.l.b16 %v417
    %v944 = vunpack.c.h.b16 %v417
    %v945 = vunpack.c.l.b16 %v418
    %v946 = vunpack.c.h.b16 %v418
    %v947 = vunpack.c.l.b16 %v419
    %v948 = vunpack.c.h.b16 %v419
    %v949 = vunpack.c.l.b16 %v420
    %v950 = vunpack.c.h.b16 %v420
    %v951 = vunpack.c.l.b16 %v421
    %v952 = vunpack.c.h.b16 %v421
    %v953 = vunpack.c.l.b16 %v422
    %v954 = vunpack.c.h.b16 %v422
    %v955 = vunpack.c.l.b16 %v423
    %v956 = vunpack.c.h.b16 %v423
    %v957 = vunpack.c.l.b16 %v424
    %v958 = vunpack.c.h.b16 %v424
    %v959 = vunpack.c.l.b16 %v425
    %v960 = vunpack.c.h.b16 %v425
    %v961 = vunpack.c.l.b16 %v426
    %v962 = vunpack.c.h.b16 %v426
    %v963 = vunpack.c.l.b16 %v427
    %v964 = vunpack.c.h.b16 %v427
    %v965 = vunpack.c.l.b16 %v428
    %v966 = vunpack.c.h.b16 %v428
    %v967 = vunpack.c.l.b16 %v429
    %v968 = vunpack.c.h.b16 %v429
    %v969 = vunpack.c.l.b16 %v430
    %v970 = vunpack.c.h.b16 %v430
    %v971 = vunpack.c.l.b16 %v431
    %v972 = vunpack.c.h.b16 %v431
    %v973 = vunpack.c.l.b16 %v432
    %v974 = vunpack.c.h.b16 %v432
    %v975 = vunpack.c.l.b16 %v433
    %v976 = vunpack.c.h.b16 %v433
    %v977 = vunpack.c.l.b16 %v434
    %v978 = vunpack.c.h.b16 %v434
    %v979 = vunpack.c.l.b16 %v435
    %v980 = vunpack.c.h.b16 %v435
    %v981 = vunpack.c.l.b16 %v436
    %v982 = vunpack.c.h.b16 %v436
    %v983 = vunpack.c.l.b16 %v437
    %v984 = vunpack.c.h.b16 %v437
    %v985 = vunpack.c.l.b16 %v438
    %v986 = vunpack.c.h.b16 %v438
    %v987 = vunpack.c.l.b16 %v439
    %v988 = vunpack.c.h.b16 %v439
    %v989 = vunpack.c.l.b16 %v440
    %v990 = vunpack.c.h.b16 %v440
    %v991 = vunpack.c.l.b16 %v441
    %v992 = vunpack.c.h.b16 %v441
    %v993 = vunpack.c.l.b16 %v442
    %v994 = vunpack.c.h.b16 %v442
    %v995 = vunpack.c.l.b16 %v443
    %v996 = vunpack.c.h.b16 %v443
    %v997 = vunpack.c.l.b16 %v444
    %v998 = vunpack.c.h.b16 %v444
    %v999 = vunpack.c.l.b16 %v445
    %v1000 = vunpack.c.h.b16 %v445
    %v1001 = vunpack.c.l.b16 %v446
    %v1002 = vunpack.c.h.b16 %v446
    %v1003 = vunpack.c.l.b16 %v447
    %v1004 = vunpack.c.h.b16 %v447
    %v1005 = vunpack.c.l.b16 %v448
    %v1006 = vunpack.c.h.b16 %v448
    %v1007 = vunpack.c.l.b16 %v449
    %v1008 = vunpack.c.h.b16 %v449
    %v1009 = vunpack.c.l.b16 %v450
    %v1010 = vunpack.c.h.b16 %v450
    %v1011 = vunpack.c.l.b16 %v451
    %v1012 = vunpack.c.h.b16 %v451
    %v1013 = vunpack.c.l.b16 %v452
    %v1014 = vunpack.c.h.b16 %v452
    %v1015 = vunpack.c.l.b16 %v453
    %v1016 = vunpack.c.h.b16 %v453
    %v1017 = vunpack.c.l.b16 %v454
    %v1018 = vunpack.c.h.b16 %v454
    %v1019 = vunpack.c.l.b16 %v455
    %v1020 = vunpack.c.h.b16 %v455
    %v1021 = vunpack.c.l.b16 %v456
    %v1022 = vunpack.c.h.b16 %v456
    %v1023 = vunpack.c.l.b16 %v457
    %v1024 = vunpack.c.h.b16 %v457
    %v1025 = vunpack.c.l.b16 %v458
    %v1026 = vunpack.c.h.b16 %v458
    %v1027 = vunpack.c.l.b16 %v459
    %v1028 = vunpack.c.h.b16 %v459
    %v1029 = vunpack.c.l.b16 %v460
    %v1030 = vunpack.c.h.b16 %v460
    %v1031 = vunpack.c.l.b16 %v461
    %v1032 = vunpack.c.h.b16 %v461
    %v1033 = vunpack.c.l.b16 %v462
    %v1034 = vunpack.c.h.b16 %v462
    %v1035 = vunpack.c.l.b16 %v463
    %v1036 = vunpack.c.h.b16 %v463
    %v1037 = vunpack.c.l.b16 %v464
    %v1038 = vunpack.c.h.b16 %v464
    %v1039 = vunpack.c.l.b16 %v465
    %v1040 = vunpack.c.h.b16 %v465
    %v1041 = vunpack.c.l.b16 %v466
    %v1042 = vunpack.c.h.b16 %v466
    %v1043 = vpack.c.b16 %v671, %v659
    %v1044 = vpack.c.b16 %v672, %v660
    %v1045 = vpack.c.b16 %v673, %v661
    %v1046 = vpack.c.b16 %v674, %v662
    %v1047 = vpack.c.b16 %v675, %v663
    %v1048 = vpack.c.b16 %v676, %v664
    %v1049 = vpack.c.b16 %v677, %v665
    %v1050 = vpack.c.b16 %v678, %v666
    %v1051 = vpack.c.b16 %v679, %v667
    %v1052 = vpack.c.b16 %v680, %v668
    %v1053 = vpack.c.b16 %v681, %v669
    %v1054 = vpack.c.b16 %v682, %v670
    %v1055 = vpack.c.b16 %v695, %v683
    %v1056 = vpack.c.b16 %v696, %v684
    %v1057 = vpack.c.b16 %v697, %v685
    %v1058 = vpack.c.b16 %v698, %v686
    %v1059 = vpack.c.b16 %v699, %v687
    %v1060 = vpack.c.b16 %v700, %v688
    %v1061 = vpack.c.b16 %v701, %v689
    %v1062 = vpack.c.b16 %v702, %v690
    %v1063 = vpack.c.b16 %v703, %v691
    %v1064 = vpack.c.b16 %v704, %v692
    %v1065 = vpack.c.b16 %v705, %v693
    %v1066 = vpack.c.b16 %v706, %v694
    %v1067 = vpack.c.b16 %v719, %v707
    %v1068 = vpack.c.b16 %v720, %v708
    %v1069 = vpack.c.b16 %v721, %v709
    %v1070 = vpack.c.b16 %v722, %v710
    %v1071 = vpack.c.b16 %v723, %v711
    %v1072 = vpack.c.b16 %v724, %v712
    %v1073 = vpack.c.b16 %v725, %v713
    %v1074 = vpack.c.b16 %v726, %v714
    %v1075 = vpack.c.b16 %v727, %v715
    %v1076 = vpack.c.b16 %v728, %v716
    %v1077 = vpack.c.b16 %v729, %v717
    %v1078 = vpack.c.b16 %v730, %v718
    %v1079 = vpack.c.b16 %v743, %v731
    %v1080 = vpack.c.b16 %v744, %v732
    %v1081 = vpack.c.b16 %v745, %v733
    %v1082 = vpack.c.b16 %v746, %v734
    %v1083 = vpack.c.b16 %v747, %v735
    %v1084 = vpack.c.b16 %v748, %v736
    %v1085 = vpack.c.b16 %v749, %v737
    %v1086 = vpack.c.b16 %v750, %v738
    %v1087 = vpack.c.b16 %v751, %v739
    %v1088 = vpack.c.b16 %v752, %v740
    %v1089 = vpack.c.b16 %v753, %v741
    %v1090 = vpack.c.b16 %v754, %v742
    %v1091 = vpack.c.b16 %v767, %v755
    %v1092 = vpack.c.b16 %v768, %v756
    %v1093 = vpack.c.b16 %v769, %v757
    %v1094 = vpack.c.b16 %v770, %v758
    %v1095 = vpack.c.b16 %v771, %v759
    %v1096 = vpack.c.b16 %v772, %v760
    %v1097 = vpack.c.b16 %v773, %v761
    %v1098 = vpack.c.b16 %v774, %v762
    %v1099 = vpack.c.b16 %v775, %v763
    %v1100 = vpack.c.b16 %v776, %v764
    %v1101 = vpack.c.b16 %v777, %v765
    %v1102 = vpack.c.b16 %v778, %v766
    %v1103 = vpack.c.b16 %v791, %v779
    %v1104 = vpack.c.b16 %v792, %v780
    %v1105 = vpack.c.b16 %v793, %v781
    %v1106 = vpack.c.b16 %v794, %v782
    %v1107 = vpack.c.b16 %v795, %v783
    %v1108 = vpack.c.b16 %v796, %v784
    %v1109 = vpack.c.b16 %v797, %v785
    %v1110 = vpack.c.b16 %v798, %v786
    %v1111 = vpack.c.b16 %v799, %v787
    %v1112 = vpack.c.b16 %v800, %v788
    %v1113 = vpack.c.b16 %v801, %v789
    %v1114 = vpack.c.b16 %v802, %v790
    %v1115 = vpack.c.b16 %v815, %v803
    %v1116 = vpack.c.b16 %v816, %v804
    %v1117 = vpack.c.b16 %v817, %v805
    %v1118 = vpack.c.b16 %v818, %v806
    %v1119 = vpack.c.b16 %v819, %v807
    %v1120 = vpack.c.b16 %v820, %v808
    %v1121 = vpack.c.b16 %v821, %v809
    %v1122 = vpack.c.b16 %v822, %v810
    %v1123 = vpack.c.b16 %v823, %v811
    %v1124 = vpack.c.b16 %v824, %v812
    %v1125 = vpack.c.b16 %v825, %v813
    %v1126 = vpack.c.b16 %v826, %v814
    %v1127 = vpack.c.b16 %v839, %v827
    %v1128 = vpack.c.b16 %v840, %v828
    %v1129 = vpack.c.b16 %v841, %v829
    %v1130 = vpack.c.b16 %v842, %v830
    %v1131 = vpack.c.b16 %v843, %v831
    %v1132 = vpack.c.b16 %v844, %v832
    %v1133 = vpack.c.b16 %v845, %v833
    %v1134 = vpack.c.b16 %v846, %v834
    %v1135 = vpack.c.b16 %v847, %v835
    %v1136 = vpack.c.b16 %v848, %v836
    %v1137 = vpack.c.b16 %v849, %v837
    %v1138 = vpack.c.b16 %v850, %v838
    %v1139 = vpack.c.b16 %v863, %v851
    %v1140 = vpack.c.b16 %v864, %v852
    %v1141 = vpack.c.b16 %v865, %v853
    %v1142 = vpack.c.b16 %v866, %v854
    %v1143 = vpack.c.b16 %v867, %v855
    %v1144 = vpack.c.b16 %v868, %v856
    %v1145 = vpack.c.b16 %v869, %v857
    %v1146 = vpack.c.b16 %v870, %v858
    %v1147 = vpack.c.b16 %v871, %v859
    %v1148 = vpack.c.b16 %v872, %v860
    %v1149 = vpack.c.b16 %v873, %v861
    %v1150 = vpack.c.b16 %v874, %v862
    %v1151 = vpack.c.b16 %v887, %v875
    %v1152 = vpack.c.b16 %v888, %v876
    %v1153 = vpack.c.b16 %v889, %v877
    %v1154 = vpack.c.b16 %v890, %v878
    %v1155 = vpack.c.b16 %v891, %v879
    %v1156 = vpack.c.b16 %v892, %v880
    %v1157 = vpack.c.b16 %v893, %v881
    %v1158 = vpack.c.b16 %v894, %v882
    %v1159 = vpack.c.b16 %v895, %v883
    %v1160 = vpack.c.b16 %v896, %v884
    %v1161 = vpack.c.b16 %v897, %v885
    %v1162 = vpack.c.b16 %v898, %v886
    %v1163 = vpack.c.b16 %v911, %v899
    %v1164 = vpack.c.b16 %v912, %v900
    %v1165 = vpack.c.b16 %v913, %v901
    %v1166 = vpack.c.b16 %v914, %v902
    %v1167 = vpack.c.b16 %v915, %v903
    %v1168 = vpack.c.b16 %v916, %v904
    %v1169 = vpack.c.b16 %v917, %v905
    %v1170 = vpack.c.b16 %v918, %v906
    %v1171 = vpack.c.b16 %v919, %v907
    %v1172 = vpack.c.b16 %v920, %v908
    %v1173 = vpack.c.b16 %v921, %v909
    %v1174 = vpack.c.b16 %v922, %v910
    %v1175 = vpack.c.b16 %v935, %v923
    %v1176 = vpack.c.b16 %v936, %v924
    %v1177 = vpack.c.b16 %v937, %v925
    %v1178 = vpack.c.b16 %v938, %v926
    %v1179 = vpack.c.b16 %v939, %v927
    %v1180 = vpack.c.b16 %v940, %v928
    %v1181 = vpack.c.b16 %v941, %v929
    %v1182 = vpack.c.b16 %v942, %v930
    %v1183 = vpack.c.b16 %v943, %v931
    %v1184 = vpack.c.b16 %v944, %v932
    %v1185 = vpack.c.b16 %v945, %v933
    %v1186 = vpack.c.b16 %v946, %v934
    %v1187 = vpack.c.b16 %v959, %v947
    %v1188 = vpack.c.b16 %v960, %v948
    %v1189 = vpack.c.b16 %v961, %v949
    %v1190 = vpack.c.b16 %v962, %v950
    %v1191 = vpack.c.b16 %v963, %v951
    %v1192 = vpack.c.b16 %v964, %v952
    %v1193 = vpack.c.b16 %v965, %v953
    %v1194 = vpack.c.b16 %v966, %v954
    %v1195 = vpack.c.b16 %v967, %v955
    %v1196 = vpack.c.b16 %v968, %v956
    %v1197 = vpack.c.b16 %v969, %v957
    %v1198 = vpack.c.b16 %v970, %v958
    %v1199 = vpack.c.b16 %v983, %v971
    %v1200 = vpack.c.b16 %v984, %v972
    %v1201 = vpack.c.b16 %v985, %v973
    %v1202 = vpack.c.b16 %v986, %v974
    %v1203 = vpack.c.b16 %v987, %v975
    %v1204 = vpack.c.b16 %v988, %v976
    %v1205 = vpack.c.b16 %v989, %v977
    %v1206 = vpack.c.b16 %v990, %v978
    %v1207 = vpack.c.b16 %v991, %v979
    %v1208 = vpack.c.b16 %v992, %v980
    %v1209 = vpack.c.b16 %v993, %v981
    %v1210 = vpack.c.b16 %v994, %v982
    %v1211 = vpack.c.b16 %v1007, %v995
    %v1212 = vpack.c.b16 %v1008, %v996
    %v1213 = vpack.c.b16 %v1009, %v997
    %v1214 = vpack.c.b16 %v1010, %v998
    %v1215 = vpack.c.b16 %v1011, %v999
    %v1216 = vpack.c.b16 %v1012, %v1000
    %v1217 = vpack.c.b16 %v1013, %v1001
    %v1218 = vpack.c.b16 %v1014, %v1002
    %v1219 = vpack.c.b16 %v1015, %v1003
    %v1220 = vpack.c.b16 %v1016, %v1004
    %v1221 = vpack.c.b16 %v1017, %v1005
    %v1222 = vpack.c.b16 %v1018, %v1006
    %v1223 = vpack.c.b16 %v1031, %v1019
    %v1224 = vpack.c.b16 %v1032, %v1020
    %v1225 = vpack.c.b16 %v1033, %v1021
    %v1226 = vpack.c.b16 %v1034, %v1022
    %v1227 = vpack.c.b16 %v1035, %v1023
    %v1228 = vpack.c.b16 %v1036, %v1024
    %v1229 = vpack.c.b16 %v1037, %v1025
    %v1230 = vpack.c.b16 %v1038, %v1026
    %v1231 = vpack.c.b16 %v1039, %v1027
    %v1232 = vpack.c.b16 %v1040, %v1028
    %v1233 = vpack.c.b16 %v1041, %v1029
    %v1234 = vpack.c.b16 %v1042, %v1030
    %1427 = vmatpush.bf16.msra.mxu0 %v1127
    %1428 = vmatpush.bf16.msra.mxu0 %v1115
    %1429 = vmatpush.bf16.msra.mxu0 %v1103
    %1430 = vmatpush.bf16.msra.mxu0 %v1091
    %1431 = vmatpush.bf16.msra.mxu0 %v1079
    %1432 = vmatpush.bf16.msra.mxu0 %v1067
    %1433 = vmatpush.bf16.msra.mxu0 %v1055
    %1434 = vmatpush.bf16.msra.mxu0 %v1043
    %1435 = vmatmul.bf16.gmra.mxu0 %v273
    %v1436 = vpop.f32.mrf.mxu0
    %v1437 = vadd.f32 0.0, %v1436
    %v1438 = vpop.f32.mrf.mxu0
    %1439 = vdwg.mxu0
    %1440 = vmatpush.bf16.msra.mxu0 %v1223
    %1441 = vmatpush.bf16.msra.mxu0 %v1211
    %1442 = vmatpush.bf16.msra.mxu0 %v1199
    %1443 = vmatpush.bf16.msra.mxu0 %v1187
    %1444 = vmatpush.bf16.msra.mxu0 %v1175
    %1445 = vmatpush.bf16.msra.mxu0 %v1163
    %1446 = vmatpush.bf16.msra.mxu0 %v1151
    %1447 = vmatpush.bf16.msra.mxu0 %v1139
    %1448 = vmatmul.bf16.gmra.mxu0 %v274
    %v1449 = vpop.f32.mrf.mxu0
    %v1450 = vadd.f32 %v1437, %v1449
    %v1451 = vpop.f32.mrf.mxu0
    %1452 = vdwg.mxu0
    %1453 = vmatpush.bf16.msra.mxu0 %v1128
    %1454 = vmatpush.bf16.msra.mxu0 %v1116
    %1455 = vmatpush.bf16.msra.mxu0 %v1104
    %1456 = vmatpush.bf16.msra.mxu0 %v1092
    %1457 = vmatpush.bf16.msra.mxu0 %v1080
    %1458 = vmatpush.bf16.msra.mxu0 %v1068
    %1459 = vmatpush.bf16.msra.mxu0 %v1056
    %1460 = vmatpush.bf16.msra.mxu0 %v1044
    %1461 = vmatmul.bf16.gmra.mxu0 %v273
    %v1462 = vpop.f32.mrf.mxu0
    %v1463 = vadd.f32 0.0, %v1462
    %v1464 = vpop.f32.mrf.mxu0
    %1465 = vdwg.mxu0
    %1466 = vmatpush.bf16.msra.mxu0 %v1224
    %1467 = vmatpush.bf16.msra.mxu0 %v1212
    %1468 = vmatpush.bf16.msra.mxu0 %v1200
    %1469 = vmatpush.bf16.msra.mxu0 %v1188
    %1470 = vmatpush.bf16.msra.mxu0 %v1176
    %1471 = vmatpush.bf16.msra.mxu0 %v1164
    %1472 = vmatpush.bf16.msra.mxu0 %v1152
    %1473 = vmatpush.bf16.msra.mxu0 %v1140
    %1474 = vmatmul.bf16.gmra.mxu0 %v274
    %v1475 = vpop.f32.mrf.mxu0
    %v1476 = vadd.f32 %v1463, %v1475
    %v1477 = vpop.f32.mrf.mxu0
    %1478 = vdwg.mxu0
    %1479 = vmatpush.bf16.msra.mxu0 %v1129
    %1480 = vmatpush.bf16.msra.mxu0 %v1117
    %1481 = vmatpush.bf16.msra.mxu0 %v1105
    %1482 = vmatpush.bf16.msra.mxu0 %v1093
    %1483 = vmatpush.bf16.msra.mxu0 %v1081
    %1484 = vmatpush.bf16.msra.mxu0 %v1069
    %1485 = vmatpush.bf16.msra.mxu0 %v1057
    %1486 = vmatpush.bf16.msra.mxu0 %v1045
    %1487 = vmatmul.bf16.gmra.mxu0 %v273
    %v1488 = vpop.f32.mrf.mxu0
    %v1489 = vadd.f32 0.0, %v1488
    %v1490 = vpop.f32.mrf.mxu0
    %1491 = vdwg.mxu0
    %1492 = vmatpush.bf16.msra.mxu0 %v1225
    %1493 = vmatpush.bf16.msra.mxu0 %v1213
    %1494 = vmatpush.bf16.msra.mxu0 %v1201
    %1495 = vmatpush.bf16.msra.mxu0 %v1189
    %1496 = vmatpush.bf16.msra.mxu0 %v1177
    %1497 = vmatpush.bf16.msra.mxu0 %v1165
    %1498 = vmatpush.bf16.msra.mxu0 %v1153
    %1499 = vmatpush.bf16.msra.mxu0 %v1141
    %1500 = vmatmul.bf16.gmra.mxu0 %v274
    %v1501 = vpop.f32.mrf.mxu0
    %v1502 = vadd.f32 %v1489, %v1501
    %v1503 = vpop.f32.mrf.mxu0
    %1504 = vdwg.mxu0
    %1505 = vmatpush.bf16.msra.mxu0 %v1130
    %1506 = vmatpush.bf16.msra.mxu0 %v1118
    %1507 = vmatpush.bf16.msra.mxu0 %v1106
    %1508 = vmatpush.bf16.msra.mxu0 %v1094
    %1509 = vmatpush.bf16.msra.mxu0 %v1082
    %1510 = vmatpush.bf16.msra.mxu0 %v1070
    %1511 = vmatpush.bf16.msra.mxu0 %v1058
    %1512 = vmatpush.bf16.msra.mxu0 %v1046
    %1513 = vmatmul.bf16.gmra.mxu0 %v273
    %v1514 = vpop.f32.mrf.mxu0
    %v1515 = vadd.f32 0.0, %v1514
    %v1516 = vpop.f32.mrf.mxu0
    %1517 = vdwg.mxu0
    %1518 = vmatpush.bf16.msra.mxu0 %v1226
    %1519 = vmatpush.bf16.msra.mxu0 %v1214
    %1520 = vmatpush.bf16.msra.mxu0 %v1202
    %1521 = vmatpush.bf16.msra.mxu0 %v1190
    %1522 = vmatpush.bf16.msra.mxu0 %v1178
    %1523 = vmatpush.bf16.msra.mxu0 %v1166
    %1524 = vmatpush.bf16.msra.mxu0 %v1154
    %1525 = vmatpush.bf16.msra.mxu0 %v1142
    %1526 = vmatmul.bf16.gmra.mxu0 %v274
    %v1527 = vpop.f32.mrf.mxu0
    %v1528 = vadd.f32 %v1515, %v1527
    %v1529 = vpop.f32.mrf.mxu0
    %1530 = vdwg.mxu0
    %1531 = vmatpush.bf16.msra.mxu0 %v1131
    %1532 = vmatpush.bf16.msra.mxu0 %v1119
    %1533 = vmatpush.bf16.msra.mxu0 %v1107
    %1534 = vmatpush.bf16.msra.mxu0 %v1095
    %1535 = vmatpush.bf16.msra.mxu0 %v1083
    %1536 = vmatpush.bf16.msra.mxu0 %v1071
    %1537 = vmatpush.bf16.msra.mxu0 %v1059
    %1538 = vmatpush.bf16.msra.mxu0 %v1047
    %1539 = vmatmul.bf16.gmra.mxu0 %v273
    %v1540 = vpop.f32.mrf.mxu0
    %v1541 = vadd.f32 0.0, %v1540
    %v1542 = vpop.f32.mrf.mxu0
    %1543 = vdwg.mxu0
    %1544 = vmatpush.bf16.msra.mxu0 %v1227
    %1545 = vmatpush.bf16.msra.mxu0 %v1215
    %1546 = vmatpush.bf16.msra.mxu0 %v1203
    %1547 = vmatpush.bf16.msra.mxu0 %v1191
    %1548 = vmatpush.bf16.msra.mxu0 %v1179
    %1549 = vmatpush.bf16.msra.mxu0 %v1167
    %1550 = vmatpush.bf16.msra.mxu0 %v1155
    %1551 = vmatpush.bf16.msra.mxu0 %v1143
    %1552 = vmatmul.bf16.gmra.mxu0 %v274
    %v1553 = vpop.f32.mrf.mxu0
    %v1554 = vadd.f32 %v1541, %v1553
    %v1555 = vpop.f32.mrf.mxu0
    %1556 = vdwg.mxu0
    %1557 = vmatpush.bf16.msra.mxu0 %v1132
    %1558 = vmatpush.bf16.msra.mxu0 %v1120
    %1559 = vmatpush.bf16.msra.mxu0 %v1108
    %1560 = vmatpush.bf16.msra.mxu0 %v1096
    %1561 = vmatpush.bf16.msra.mxu0 %v1084
    %1562 = vmatpush.bf16.msra.mxu0 %v1072
    %1563 = vmatpush.bf16.msra.mxu0 %v1060
    %1564 = vmatpush.bf16.msra.mxu0 %v1048
    %1565 = vmatmul.bf16.gmra.mxu0 %v273
    %v1566 = vpop.f32.mrf.mxu0
    %v1567 = vadd.f32 0.0, %v1566
    %v1568 = vpop.f32.mrf.mxu0
    %1569 = vdwg.mxu0
    %1570 = vmatpush.bf16.msra.mxu0 %v1228
    %1571 = vmatpush.bf16.msra.mxu0 %v1216
    %1572 = vmatpush.bf16.msra.mxu0 %v1204
    %1573 = vmatpush.bf16.msra.mxu0 %v1192
    %1574 = vmatpush.bf16.msra.mxu0 %v1180
    %1575 = vmatpush.bf16.msra.mxu0 %v1168
    %1576 = vmatpush.bf16.msra.mxu0 %v1156
    %1577 = vmatpush.bf16.msra.mxu0 %v1144
    %1578 = vmatmul.bf16.gmra.mxu0 %v274
    %v1579 = vpop.f32.mrf.mxu0
    %v1580 = vadd.f32 %v1567, %v1579
    %v1581 = vpop.f32.mrf.mxu0
    %1582 = vdwg.mxu0
    %1583 = vmatpush.bf16.msra.mxu0 %v1133
    %1584 = vmatpush.bf16.msra.mxu0 %v1121
    %1585 = vmatpush.bf16.msra.mxu0 %v1109
    %1586 = vmatpush.bf16.msra.mxu0 %v1097
    %1587 = vmatpush.bf16.msra.mxu0 %v1085
    %1588 = vmatpush.bf16.msra.mxu0 %v1073
    %1589 = vmatpush.bf16.msra.mxu0 %v1061
    %1590 = vmatpush.bf16.msra.mxu0 %v1049
    %1591 = vmatmul.bf16.gmra.mxu0 %v273
    %v1592 = vpop.f32.mrf.mxu0
    %v1593 = vadd.f32 0.0, %v1592
    %v1594 = vpop.f32.mrf.mxu0
    %1595 = vdwg.mxu0
    %1596 = vmatpush.bf16.msra.mxu0 %v1229
    %1597 = vmatpush.bf16.msra.mxu0 %v1217
    %1598 = vmatpush.bf16.msra.mxu0 %v1205
    %1599 = vmatpush.bf16.msra.mxu0 %v1193
    %1600 = vmatpush.bf16.msra.mxu0 %v1181
    %1601 = vmatpush.bf16.msra.mxu0 %v1169
    %1602 = vmatpush.bf16.msra.mxu0 %v1157
    %1603 = vmatpush.bf16.msra.mxu0 %v1145
    %1604 = vmatmul.bf16.gmra.mxu0 %v274
    %v1605 = vpop.f32.mrf.mxu0
    %v1606 = vadd.f32 %v1593, %v1605
    %v1607 = vpop.f32.mrf.mxu0
    %1608 = vdwg.mxu0
    %1609 = vmatpush.bf16.msra.mxu0 %v1134
    %1610 = vmatpush.bf16.msra.mxu0 %v1122
    %1611 = vmatpush.bf16.msra.mxu0 %v1110
    %1612 = vmatpush.bf16.msra.mxu0 %v1098
    %1613 = vmatpush.bf16.msra.mxu0 %v1086
    %1614 = vmatpush.bf16.msra.mxu0 %v1074
    %1615 = vmatpush.bf16.msra.mxu0 %v1062
    %1616 = vmatpush.bf16.msra.mxu0 %v1050
    %1617 = vmatmul.bf16.gmra.mxu0 %v273
    %v1618 = vpop.f32.mrf.mxu0
    %v1619 = vadd.f32 0.0, %v1618
    %v1620 = vpop.f32.mrf.mxu0
    %1621 = vdwg.mxu0
    %1622 = vmatpush.bf16.msra.mxu0 %v1230
    %1623 = vmatpush.bf16.msra.mxu0 %v1218
    %1624 = vmatpush.bf16.msra.mxu0 %v1206
    %1625 = vmatpush.bf16.msra.mxu0 %v1194
    %1626 = vmatpush.bf16.msra.mxu0 %v1182
    %1627 = vmatpush.bf16.msra.mxu0 %v1170
    %1628 = vmatpush.bf16.msra.mxu0 %v1158
    %1629 = vmatpush.bf16.msra.mxu0 %v1146
    %1630 = vmatmul.bf16.gmra.mxu0 %v274
    %v1631 = vpop.f32.mrf.mxu0
    %v1632 = vadd.f32 %v1619, %v1631
    %v1633 = vpop.f32.mrf.mxu0
    %1634 = vdwg.mxu0
    %1635 = vmatpush.bf16.msra.mxu0 %v1135
    %1636 = vmatpush.bf16.msra.mxu0 %v1123
    %1637 = vmatpush.bf16.msra.mxu0 %v1111
    %1638 = vmatpush.bf16.msra.mxu0 %v1099
    %1639 = vmatpush.bf16.msra.mxu0 %v1087
    %1640 = vmatpush.bf16.msra.mxu0 %v1075
    %1641 = vmatpush.bf16.msra.mxu0 %v1063
    %1642 = vmatpush.bf16.msra.mxu0 %v1051
    %1643 = vmatmul.bf16.gmra.mxu0 %v273
    %v1644 = vpop.f32.mrf.mxu0
    %v1645 = vadd.f32 0.0, %v1644
    %v1646 = vpop.f32.mrf.mxu0
    %1647 = vdwg.mxu0
    %1648 = vmatpush.bf16.msra.mxu0 %v1231
    %1649 = vmatpush.bf16.msra.mxu0 %v1219
    %1650 = vmatpush.bf16.msra.mxu0 %v1207
    %1651 = vmatpush.bf16.msra.mxu0 %v1195
    %1652 = vmatpush.bf16.msra.mxu0 %v1183
    %1653 = vmatpush.bf16.msra.mxu0 %v1171
    %1654 = vmatpush.bf16.msra.mxu0 %v1159
    %1655 = vmatpush.bf16.msra.mxu0 %v1147
    %1656 = vmatmul.bf16.gmra.mxu0 %v274
    %v1657 = vpop.f32.mrf.mxu0
    %v1658 = vadd.f32 %v1645, %v1657
    %v1659 = vpop.f32.mrf.mxu0
    %1660 = vdwg.mxu0
    %1661 = vmatpush.bf16.msra.mxu0 %v1136
    %1662 = vmatpush.bf16.msra.mxu0 %v1124
    %1663 = vmatpush.bf16.msra.mxu0 %v1112
    %1664 = vmatpush.bf16.msra.mxu0 %v1100
    %1665 = vmatpush.bf16.msra.mxu0 %v1088
    %1666 = vmatpush.bf16.msra.mxu0 %v1076
    %1667 = vmatpush.bf16.msra.mxu0 %v1064
    %1668 = vmatpush.bf16.msra.mxu0 %v1052
    %1669 = vmatmul.bf16.gmra.mxu0 %v273
    %v1670 = vpop.f32.mrf.mxu0
    %v1671 = vadd.f32 0.0, %v1670
    %v1672 = vpop.f32.mrf.mxu0
    %1673 = vdwg.mxu0
    %1674 = vmatpush.bf16.msra.mxu0 %v1232
    %1675 = vmatpush.bf16.msra.mxu0 %v1220
    %1676 = vmatpush.bf16.msra.mxu0 %v1208
    %1677 = vmatpush.bf16.msra.mxu0 %v1196
    %1678 = vmatpush.bf16.msra.mxu0 %v1184
    %1679 = vmatpush.bf16.msra.mxu0 %v1172
    %1680 = vmatpush.bf16.msra.mxu0 %v1160
    %1681 = vmatpush.bf16.msra.mxu0 %v1148
    %1682 = vmatmul.bf16.gmra.mxu0 %v274
    %v1683 = vpop.f32.mrf.mxu0
    %v1684 = vadd.f32 %v1671, %v1683
    %v1685 = vpop.f32.mrf.mxu0
    %1686 = vdwg.mxu0
    %1687 = vmatpush.bf16.msra.mxu0 %v1137
    %1688 = vmatpush.bf16.msra.mxu0 %v1125
    %1689 = vmatpush.bf16.msra.mxu0 %v1113
    %1690 = vmatpush.bf16.msra.mxu0 %v1101
    %1691 = vmatpush.bf16.msra.mxu0 %v1089
    %1692 = vmatpush.bf16.msra.mxu0 %v1077
    %1693 = vmatpush.bf16.msra.mxu0 %v1065
    %1694 = vmatpush.bf16.msra.mxu0 %v1053
    %1695 = vmatmul.bf16.gmra.mxu0 %v273
    %v1696 = vpop.f32.mrf.mxu0
    %v1697 = vadd.f32 0.0, %v1696
    %v1698 = vpop.f32.mrf.mxu0
    %1699 = vdwg.mxu0
    %1700 = vmatpush.bf16.msra.mxu0 %v1233
    %1701 = vmatpush.bf16.msra.mxu0 %v1221
    %1702 = vmatpush.bf16.msra.mxu0 %v1209
    %1703 = vmatpush.bf16.msra.mxu0 %v1197
    %1704 = vmatpush.bf16.msra.mxu0 %v1185
    %1705 = vmatpush.bf16.msra.mxu0 %v1173
    %1706 = vmatpush.bf16.msra.mxu0 %v1161
    %1707 = vmatpush.bf16.msra.mxu0 %v1149
    %1708 = vmatmul.bf16.gmra.mxu0 %v274
    %v1709 = vpop.f32.mrf.mxu0
    %v1710 = vadd.f32 %v1697, %v1709
    %v1711 = vpop.f32.mrf.mxu0
    %1712 = vdwg.mxu0
    %1713 = vmatpush.bf16.msra.mxu0 %v1138
    %1714 = vmatpush.bf16.msra.mxu0 %v1126
    %1715 = vmatpush.bf16.msra.mxu0 %v1114
    %1716 = vmatpush.bf16.msra.mxu0 %v1102
    %1717 = vmatpush.bf16.msra.mxu0 %v1090
    %1718 = vmatpush.bf16.msra.mxu0 %v1078
    %1719 = vmatpush.bf16.msra.mxu0 %v1066
    %1720 = vmatpush.bf16.msra.mxu0 %v1054
    %1721 = vmatmul.bf16.gmra.mxu0 %v273
    %v1722 = vpop.f32.mrf.mxu0
    %v1723 = vadd.f32 0.0, %v1722
    %v1724 = vpop.f32.mrf.mxu0
    %1725 = vdwg.mxu0
    %1726 = vmatpush.bf16.msra.mxu0 %v1234
    %1727 = vmatpush.bf16.msra.mxu0 %v1222
    %1728 = vmatpush.bf16.msra.mxu0 %v1210
    %1729 = vmatpush.bf16.msra.mxu0 %v1198
    %1730 = vmatpush.bf16.msra.mxu0 %v1186
    %1731 = vmatpush.bf16.msra.mxu0 %v1174
    %1732 = vmatpush.bf16.msra.mxu0 %v1162
    %1733 = vmatpush.bf16.msra.mxu0 %v1150
    %1734 = vmatmul.bf16.gmra.mxu0 %v274
    %v1735 = vpop.f32.mrf.mxu0
    %v1736 = vadd.f32 %v1723, %v1735
    %v1737 = vpop.f32.mrf.mxu0
    %1738 = vdwg.mxu0
    %v1931 = vunpack.c.l.b16 %v81
    %v1932 = vunpack.c.h.b16 %v81
    %v1933 = vunpack.c.l.b16 %v82
    %v1934 = vunpack.c.h.b16 %v82
    %v1935 = vunpack.c.l.b16 %v83
    %v1936 = vunpack.c.h.b16 %v83
    %v1937 = vunpack.c.l.b16 %v84
    %v1938 = vunpack.c.h.b16 %v84
    %v1939 = vunpack.c.l.b16 %v85
    %v1940 = vunpack.c.h.b16 %v85
    %v1941 = vunpack.c.l.b16 %v86
    %v1942 = vunpack.c.h.b16 %v86
    %v1943 = vunpack.c.l.b16 %v87
    %v1944 = vunpack.c.h.b16 %v87
    %v1945 = vunpack.c.l.b16 %v88
    %v1946 = vunpack.c.h.b16 %v88
    %v1947 = vunpack.c.l.b16 %v89
    %v1948 = vunpack.c.h.b16 %v89
    %v1949 = vunpack.c.l.b16 %v90
    %v1950 = vunpack.c.h.b16 %v90
    %v1951 = vunpack.c.l.b16 %v91
    %v1952 = vunpack.c.h.b16 %v91
    %v1953 = vunpack.c.l.b16 %v92
    %v1954 = vunpack.c.h.b16 %v92
    %v1955 = vunpack.c.l.b16 %v93
    %v1956 = vunpack.c.h.b16 %v93
    %v1957 = vunpack.c.l.b16 %v94
    %v1958 = vunpack.c.h.b16 %v94
    %v1959 = vunpack.c.l.b16 %v95
    %v1960 = vunpack.c.h.b16 %v95
    %v1961 = vunpack.c.l.b16 %v96
    %v1962 = vunpack.c.h.b16 %v96
    %v1963 = vunpack.c.l.b16 %v97
    %v1964 = vunpack.c.h.b16 %v97
    %v1965 = vunpack.c.l.b16 %v98
    %v1966 = vunpack.c.h.b16 %v98
    %v1967 = vunpack.c.l.b16 %v99
    %v1968 = vunpack.c.h.b16 %v99
    %v1969 = vunpack.c.l.b16 %v100
    %v1970 = vunpack.c.h.b16 %v100
    %v1971 = vunpack.c.l.b16 %v101
    %v1972 = vunpack.c.h.b16 %v101
    %v1973 = vunpack.c.l.b16 %v102
    %v1974 = vunpack.c.h.b16 %v102
    %v1975 = vunpack.c.l.b16 %v103
    %v1976 = vunpack.c.h.b16 %v103
    %v1977 = vunpack.c.l.b16 %v104
    %v1978 = vunpack.c.h.b16 %v104
    %v1979 = vunpack.c.l.b16 %v105
    %v1980 = vunpack.c.h.b16 %v105
    %v1981 = vunpack.c.l.b16 %v106
    %v1982 = vunpack.c.h.b16 %v106
    %v1983 = vunpack.c.l.b16 %v107
    %v1984 = vunpack.c.h.b16 %v107
    %v1985 = vunpack.c.l.b16 %v108
    %v1986 = vunpack.c.h.b16 %v108
    %v1987 = vunpack.c.l.b16 %v109
    %v1988 = vunpack.c.h.b16 %v109
    %v1989 = vunpack.c.l.b16 %v110
    %v1990 = vunpack.c.h.b16 %v110
    %v1991 = vunpack.c.l.b16 %v111
    %v1992 = vunpack.c.h.b16 %v111
    %v1993 = vunpack.c.l.b16 %v112
    %v1994 = vunpack.c.h.b16 %v112
    %v1995 = vunpack.c.l.b16 %v113
    %v1996 = vunpack.c.h.b16 %v113
    %v1997 = vunpack.c.l.b16 %v114
    %v1998 = vunpack.c.h.b16 %v114
    %v1999 = vunpack.c.l.b16 %v115
    %v2000 = vunpack.c.h.b16 %v115
    %v2001 = vunpack.c.l.b16 %v116
    %v2002 = vunpack.c.h.b16 %v116
    %v2003 = vunpack.c.l.b16 %v117
    %v2004 = vunpack.c.h.b16 %v117
    %v2005 = vunpack.c.l.b16 %v118
    %v2006 = vunpack.c.h.b16 %v118
    %v2007 = vunpack.c.l.b16 %v119
    %v2008 = vunpack.c.h.b16 %v119
    %v2009 = vunpack.c.l.b16 %v120
    %v2010 = vunpack.c.h.b16 %v120
    %v2011 = vunpack.c.l.b16 %v121
    %v2012 = vunpack.c.h.b16 %v121
    %v2013 = vunpack.c.l.b16 %v122
    %v2014 = vunpack.c.h.b16 %v122
    %v2015 = vunpack.c.l.b16 %v123
    %v2016 = vunpack.c.h.b16 %v123
    %v2017 = vunpack.c.l.b16 %v124
    %v2018 = vunpack.c.h.b16 %v124
    %v2019 = vunpack.c.l.b16 %v125
    %v2020 = vunpack.c.h.b16 %v125
    %v2021 = vunpack.c.l.b16 %v126
    %v2022 = vunpack.c.h.b16 %v126
    %v2023 = vunpack.c.l.b16 %v127
    %v2024 = vunpack.c.h.b16 %v127
    %v2025 = vunpack.c.l.b16 %v128
    %v2026 = vunpack.c.h.b16 %v128
    %v2027 = vunpack.c.l.b16 %v129
    %v2028 = vunpack.c.h.b16 %v129
    %v2029 = vunpack.c.l.b16 %v130
    %v2030 = vunpack.c.h.b16 %v130
    %v2031 = vunpack.c.l.b16 %v131
    %v2032 = vunpack.c.h.b16 %v131
    %v2033 = vunpack.c.l.b16 %v132
    %v2034 = vunpack.c.h.b16 %v132
    %v2035 = vunpack.c.l.b16 %v133
    %v2036 = vunpack.c.h.b16 %v133
    %v2037 = vunpack.c.l.b16 %v134
    %v2038 = vunpack.c.h.b16 %v134
    %v2039 = vunpack.c.l.b16 %v135
    %v2040 = vunpack.c.h.b16 %v135
    %v2041 = vunpack.c.l.b16 %v136
    %v2042 = vunpack.c.h.b16 %v136
    %v2043 = vunpack.c.l.b16 %v137
    %v2044 = vunpack.c.h.b16 %v137
    %v2045 = vunpack.c.l.b16 %v138
    %v2046 = vunpack.c.h.b16 %v138
    %v2047 = vunpack.c.l.b16 %v139
    %v2048 = vunpack.c.h.b16 %v139
    %v2049 = vunpack.c.l.b16 %v140
    %v2050 = vunpack.c.h.b16 %v140
    %v2051 = vunpack.c.l.b16 %v141
    %v2052 = vunpack.c.h.b16 %v141
    %v2053 = vunpack.c.l.b16 %v142
    %v2054 = vunpack.c.h.b16 %v142
    %v2055 = vunpack.c.l.b16 %v143
    %v2056 = vunpack.c.h.b16 %v143
    %v2057 = vunpack.c.l.b16 %v144
    %v2058 = vunpack.c.h.b16 %v144
    %v2059 = vunpack.c.l.b16 %v145
    %v2060 = vunpack.c.h.b16 %v145
    %v2061 = vunpack.c.l.b16 %v146
    %v2062 = vunpack.c.h.b16 %v146
    %v2063 = vunpack.c.l.b16 %v147
    %v2064 = vunpack.c.h.b16 %v147
    %v2065 = vunpack.c.l.b16 %v148
    %v2066 = vunpack.c.h.b16 %v148
    %v2067 = vunpack.c.l.b16 %v149
    %v2068 = vunpack.c.h.b16 %v149
    %v2069 = vunpack.c.l.b16 %v150
    %v2070 = vunpack.c.h.b16 %v150
    %v2071 = vunpack.c.l.b16 %v151
    %v2072 = vunpack.c.h.b16 %v151
    %v2073 = vunpack.c.l.b16 %v152
    %v2074 = vunpack.c.h.b16 %v152
    %v2075 = vunpack.c.l.b16 %v153
    %v2076 = vunpack.c.h.b16 %v153
    %v2077 = vunpack.c.l.b16 %v154
    %v2078 = vunpack.c.h.b16 %v154
    %v2079 = vunpack.c.l.b16 %v155
    %v2080 = vunpack.c.h.b16 %v155
    %v2081 = vunpack.c.l.b16 %v156
    %v2082 = vunpack.c.h.b16 %v156
    %v2083 = vunpack.c.l.b16 %v157
    %v2084 = vunpack.c.h.b16 %v157
    %v2085 = vunpack.c.l.b16 %v158
    %v2086 = vunpack.c.h.b16 %v158
    %v2087 = vunpack.c.l.b16 %v159
    %v2088 = vunpack.c.h.b16 %v159
    %v2089 = vunpack.c.l.b16 %v160
    %v2090 = vunpack.c.h.b16 %v160
    %v2091 = vunpack.c.l.b16 %v161
    %v2092 = vunpack.c.h.b16 %v161
    %v2093 = vunpack.c.l.b16 %v162
    %v2094 = vunpack.c.h.b16 %v162
    %v2095 = vunpack.c.l.b16 %v163
    %v2096 = vunpack.c.h.b16 %v163
    %v2097 = vunpack.c.l.b16 %v164
    %v2098 = vunpack.c.h.b16 %v164
    %v2099 = vunpack.c.l.b16 %v165
    %v2100 = vunpack.c.h.b16 %v165
    %v2101 = vunpack.c.l.b16 %v166
    %v2102 = vunpack.c.h.b16 %v166
    %v2103 = vunpack.c.l.b16 %v167
    %v2104 = vunpack.c.h.b16 %v167
    %v2105 = vunpack.c.l.b16 %v168
    %v2106 = vunpack.c.h.b16 %v168
    %v2107 = vunpack.c.l.b16 %v169
    %v2108 = vunpack.c.h.b16 %v169
    %v2109 = vunpack.c.l.b16 %v170
    %v2110 = vunpack.c.h.b16 %v170
    %v2111 = vunpack.c.l.b16 %v171
    %v2112 = vunpack.c.h.b16 %v171
    %v2113 = vunpack.c.l.b16 %v172
    %v2114 = vunpack.c.h.b16 %v172
    %v2115 = vunpack.c.l.b16 %v173
    %v2116 = vunpack.c.h.b16 %v173
    %v2117 = vunpack.c.l.b16 %v174
    %v2118 = vunpack.c.h.b16 %v174
    %v2119 = vunpack.c.l.b16 %v175
    %v2120 = vunpack.c.h.b16 %v175
    %v2121 = vunpack.c.l.b16 %v176
    %v2122 = vunpack.c.h.b16 %v176
    %v2123 = vunpack.c.l.b16 %v177
    %v2124 = vunpack.c.h.b16 %v177
    %v2125 = vunpack.c.l.b16 %v178
    %v2126 = vunpack.c.h.b16 %v178
    %v2127 = vunpack.c.l.b16 %v179
    %v2128 = vunpack.c.h.b16 %v179
    %v2129 = vunpack.c.l.b16 %v180
    %v2130 = vunpack.c.h.b16 %v180
    %v2131 = vunpack.c.l.b16 %v181
    %v2132 = vunpack.c.h.b16 %v181
    %v2133 = vunpack.c.l.b16 %v182
    %v2134 = vunpack.c.h.b16 %v182
    %v2135 = vunpack.c.l.b16 %v183
    %v2136 = vunpack.c.h.b16 %v183
    %v2137 = vunpack.c.l.b16 %v184
    %v2138 = vunpack.c.h.b16 %v184
    %v2139 = vunpack.c.l.b16 %v185
    %v2140 = vunpack.c.h.b16 %v185
    %v2141 = vunpack.c.l.b16 %v186
    %v2142 = vunpack.c.h.b16 %v186
    %v2143 = vunpack.c.l.b16 %v187
    %v2144 = vunpack.c.h.b16 %v187
    %v2145 = vunpack.c.l.b16 %v188
    %v2146 = vunpack.c.h.b16 %v188
    %v2147 = vunpack.c.l.b16 %v189
    %v2148 = vunpack.c.h.b16 %v189
    %v2149 = vunpack.c.l.b16 %v190
    %v2150 = vunpack.c.h.b16 %v190
    %v2151 = vunpack.c.l.b16 %v191
    %v2152 = vunpack.c.h.b16 %v191
    %v2153 = vunpack.c.l.b16 %v192
    %v2154 = vunpack.c.h.b16 %v192
    %v2155 = vunpack.c.l.b16 %v193
    %v2156 = vunpack.c.h.b16 %v193
    %v2157 = vunpack.c.l.b16 %v194
    %v2158 = vunpack.c.h.b16 %v194
    %v2159 = vunpack.c.l.b16 %v195
    %v2160 = vunpack.c.h.b16 %v195
    %v2161 = vunpack.c.l.b16 %v196
    %v2162 = vunpack.c.h.b16 %v196
    %v2163 = vunpack.c.l.b16 %v197
    %v2164 = vunpack.c.h.b16 %v197
    %v2165 = vunpack.c.l.b16 %v198
    %v2166 = vunpack.c.h.b16 %v198
    %v2167 = vunpack.c.l.b16 %v199
    %v2168 = vunpack.c.h.b16 %v199
    %v2169 = vunpack.c.l.b16 %v200
    %v2170 = vunpack.c.h.b16 %v200
    %v2171 = vunpack.c.l.b16 %v201
    %v2172 = vunpack.c.h.b16 %v201
    %v2173 = vunpack.c.l.b16 %v202
    %v2174 = vunpack.c.h.b16 %v202
    %v2175 = vunpack.c.l.b16 %v203
    %v2176 = vunpack.c.h.b16 %v203
    %v2177 = vunpack.c.l.b16 %v204
    %v2178 = vunpack.c.h.b16 %v204
    %v2179 = vunpack.c.l.b16 %v205
    %v2180 = vunpack.c.h.b16 %v205
    %v2181 = vunpack.c.l.b16 %v206
    %v2182 = vunpack.c.h.b16 %v206
    %v2183 = vunpack.c.l.b16 %v207
    %v2184 = vunpack.c.h.b16 %v207
    %v2185 = vunpack.c.l.b16 %v208
    %v2186 = vunpack.c.h.b16 %v208
    %v2187 = vunpack.c.l.b16 %v209
    %v2188 = vunpack.c.h.b16 %v209
    %v2189 = vunpack.c.l.b16 %v210
    %v2190 = vunpack.c.h.b16 %v210
    %v2191 = vunpack.c.l.b16 %v211
    %v2192 = vunpack.c.h.b16 %v211
    %v2193 = vunpack.c.l.b16 %v212
    %v2194 = vunpack.c.h.b16 %v212
    %v2195 = vunpack.c.l.b16 %v213
    %v2196 = vunpack.c.h.b16 %v213
    %v2197 = vunpack.c.l.b16 %v214
    %v2198 = vunpack.c.h.b16 %v214
    %v2199 = vunpack.c.l.b16 %v215
    %v2200 = vunpack.c.h.b16 %v215
    %v2201 = vunpack.c.l.b16 %v216
    %v2202 = vunpack.c.h.b16 %v216
    %v2203 = vunpack.c.l.b16 %v217
    %v2204 = vunpack.c.h.b16 %v217
    %v2205 = vunpack.c.l.b16 %v218
    %v2206 = vunpack.c.h.b16 %v218
    %v2207 = vunpack.c.l.b16 %v219
    %v2208 = vunpack.c.h.b16 %v219
    %v2209 = vunpack.c.l.b16 %v220
    %v2210 = vunpack.c.h.b16 %v220
    %v2211 = vunpack.c.l.b16 %v221
    %v2212 = vunpack.c.h.b16 %v221
    %v2213 = vunpack.c.l.b16 %v222
    %v2214 = vunpack.c.h.b16 %v222
    %v2215 = vunpack.c.l.b16 %v223
    %v2216 = vunpack.c.h.b16 %v223
    %v2217 = vunpack.c.l.b16 %v224
    %v2218 = vunpack.c.h.b16 %v224
    %v2219 = vunpack.c.l.b16 %v225
    %v2220 = vunpack.c.h.b16 %v225
    %v2221 = vunpack.c.l.b16 %v226
    %v2222 = vunpack.c.h.b16 %v226
    %v2223 = vunpack.c.l.b16 %v227
    %v2224 = vunpack.c.h.b16 %v227
    %v2225 = vunpack.c.l.b16 %v228
    %v2226 = vunpack.c.h.b16 %v228
    %v2227 = vunpack.c.l.b16 %v229
    %v2228 = vunpack.c.h.b16 %v229
    %v2229 = vunpack.c.l.b16 %v230
    %v2230 = vunpack.c.h.b16 %v230
    %v2231 = vunpack.c.l.b16 %v231
    %v2232 = vunpack.c.h.b16 %v231
    %v2233 = vunpack.c.l.b16 %v232
    %v2234 = vunpack.c.h.b16 %v232
    %v2235 = vunpack.c.l.b16 %v233
    %v2236 = vunpack.c.h.b16 %v233
    %v2237 = vunpack.c.l.b16 %v234
    %v2238 = vunpack.c.h.b16 %v234
    %v2239 = vunpack.c.l.b16 %v235
    %v2240 = vunpack.c.h.b16 %v235
    %v2241 = vunpack.c.l.b16 %v236
    %v2242 = vunpack.c.h.b16 %v236
    %v2243 = vunpack.c.l.b16 %v237
    %v2244 = vunpack.c.h.b16 %v237
    %v2245 = vunpack.c.l.b16 %v238
    %v2246 = vunpack.c.h.b16 %v238
    %v2247 = vunpack.c.l.b16 %v239
    %v2248 = vunpack.c.h.b16 %v239
    %v2249 = vunpack.c.l.b16 %v240
    %v2250 = vunpack.c.h.b16 %v240
    %v2251 = vunpack.c.l.b16 %v241
    %v2252 = vunpack.c.h.b16 %v241
    %v2253 = vunpack.c.l.b16 %v242
    %v2254 = vunpack.c.h.b16 %v242
    %v2255 = vunpack.c.l.b16 %v243
    %v2256 = vunpack.c.h.b16 %v243
    %v2257 = vunpack.c.l.b16 %v244
    %v2258 = vunpack.c.h.b16 %v244
    %v2259 = vunpack.c.l.b16 %v245
    %v2260 = vunpack.c.h.b16 %v245
    %v2261 = vunpack.c.l.b16 %v246
    %v2262 = vunpack.c.h.b16 %v246
    %v2263 = vunpack.c.l.b16 %v247
    %v2264 = vunpack.c.h.b16 %v247
    %v2265 = vunpack.c.l.b16 %v248
    %v2266 = vunpack.c.h.b16 %v248
    %v2267 = vunpack.c.l.b16 %v249
    %v2268 = vunpack.c.h.b16 %v249
    %v2269 = vunpack.c.l.b16 %v250
    %v2270 = vunpack.c.h.b16 %v250
    %v2271 = vunpack.c.l.b16 %v251
    %v2272 = vunpack.c.h.b16 %v251
    %v2273 = vunpack.c.l.b16 %v252
    %v2274 = vunpack.c.h.b16 %v252
    %v2275 = vunpack.c.l.b16 %v253
    %v2276 = vunpack.c.h.b16 %v253
    %v2277 = vunpack.c.l.b16 %v254
    %v2278 = vunpack.c.h.b16 %v254
    %v2279 = vunpack.c.l.b16 %v255
    %v2280 = vunpack.c.h.b16 %v255
    %v2281 = vunpack.c.l.b16 %v256
    %v2282 = vunpack.c.h.b16 %v256
    %v2283 = vunpack.c.l.b16 %v257
    %v2284 = vunpack.c.h.b16 %v257
    %v2285 = vunpack.c.l.b16 %v258
    %v2286 = vunpack.c.h.b16 %v258
    %v2287 = vunpack.c.l.b16 %v259
    %v2288 = vunpack.c.h.b16 %v259
    %v2289 = vunpack.c.l.b16 %v260
    %v2290 = vunpack.c.h.b16 %v260
    %v2291 = vunpack.c.l.b16 %v261
    %v2292 = vunpack.c.h.b16 %v261
    %v2293 = vunpack.c.l.b16 %v262
    %v2294 = vunpack.c.h.b16 %v262
    %v2295 = vunpack.c.l.b16 %v263
    %v2296 = vunpack.c.h.b16 %v263
    %v2297 = vunpack.c.l.b16 %v264
    %v2298 = vunpack.c.h.b16 %v264
    %v2299 = vunpack.c.l.b16 %v265
    %v2300 = vunpack.c.h.b16 %v265
    %v2301 = vunpack.c.l.b16 %v266
    %v2302 = vunpack.c.h.b16 %v266
    %v2303 = vunpack.c.l.b16 %v267
    %v2304 = vunpack.c.h.b16 %v267
    %v2305 = vunpack.c.l.b16 %v268
    %v2306 = vunpack.c.h.b16 %v268
    %v2307 = vunpack.c.l.b16 %v269
    %v2308 = vunpack.c.h.b16 %v269
    %v2309 = vunpack.c.l.b16 %v270
    %v2310 = vunpack.c.h.b16 %v270
    %v2311 = vunpack.c.l.b16 %v271
    %v2312 = vunpack.c.h.b16 %v271
    %v2313 = vunpack.c.l.b16 %v272
    %v2314 = vunpack.c.h.b16 %v272
    %v2315 = vpack.c.b16 %v1943, %v1931
    %v2316 = vpack.c.b16 %v1944, %v1932
    %v2317 = vpack.c.b16 %v1945, %v1933
    %v2318 = vpack.c.b16 %v1946, %v1934
    %v2319 = vpack.c.b16 %v1947, %v1935
    %v2320 = vpack.c.b16 %v1948, %v1936
    %v2321 = vpack.c.b16 %v1949, %v1937
    %v2322 = vpack.c.b16 %v1950, %v1938
    %v2323 = vpack.c.b16 %v1951, %v1939
    %v2324 = vpack.c.b16 %v1952, %v1940
    %v2325 = vpack.c.b16 %v1953, %v1941
    %v2326 = vpack.c.b16 %v1954, %v1942
    %v2327 = vpack.c.b16 %v1967, %v1955
    %v2328 = vpack.c.b16 %v1968, %v1956
    %v2329 = vpack.c.b16 %v1969, %v1957
    %v2330 = vpack.c.b16 %v1970, %v1958
    %v2331 = vpack.c.b16 %v1971, %v1959
    %v2332 = vpack.c.b16 %v1972, %v1960
    %v2333 = vpack.c.b16 %v1973, %v1961
    %v2334 = vpack.c.b16 %v1974, %v1962
    %v2335 = vpack.c.b16 %v1975, %v1963
    %v2336 = vpack.c.b16 %v1976, %v1964
    %v2337 = vpack.c.b16 %v1977, %v1965
    %v2338 = vpack.c.b16 %v1978, %v1966
    %v2339 = vpack.c.b16 %v1991, %v1979
    %v2340 = vpack.c.b16 %v1992, %v1980
    %v2341 = vpack.c.b16 %v1993, %v1981
    %v2342 = vpack.c.b16 %v1994, %v1982
    %v2343 = vpack.c.b16 %v1995, %v1983
    %v2344 = vpack.c.b16 %v1996, %v1984
    %v2345 = vpack.c.b16 %v1997, %v1985
    %v2346 = vpack.c.b16 %v1998, %v1986
    %v2347 = vpack.c.b16 %v1999, %v1987
    %v2348 = vpack.c.b16 %v2000, %v1988
    %v2349 = vpack.c.b16 %v2001, %v1989
    %v2350 = vpack.c.b16 %v2002, %v1990
    %v2351 = vpack.c.b16 %v2015, %v2003
    %v2352 = vpack.c.b16 %v2016, %v2004
    %v2353 = vpack.c.b16 %v2017, %v2005
    %v2354 = vpack.c.b16 %v2018, %v2006
    %v2355 = vpack.c.b16 %v2019, %v2007
    %v2356 = vpack.c.b16 %v2020, %v2008
    %v2357 = vpack.c.b16 %v2021, %v2009
    %v2358 = vpack.c.b16 %v2022, %v2010
    %v2359 = vpack.c.b16 %v2023, %v2011
    %v2360 = vpack.c.b16 %v2024, %v2012
    %v2361 = vpack.c.b16 %v2025, %v2013
    %v2362 = vpack.c.b16 %v2026, %v2014
    %v2363 = vpack.c.b16 %v2039, %v2027
    %v2364 = vpack.c.b16 %v2040, %v2028
    %v2365 = vpack.c.b16 %v2041, %v2029
    %v2366 = vpack.c.b16 %v2042, %v2030
    %v2367 = vpack.c.b16 %v2043, %v2031
    %v2368 = vpack.c.b16 %v2044, %v2032
    %v2369 = vpack.c.b16 %v2045, %v2033
    %v2370 = vpack.c.b16 %v2046, %v2034
    %v2371 = vpack.c.b16 %v2047, %v2035
    %v2372 = vpack.c.b16 %v2048, %v2036
    %v2373 = vpack.c.b16 %v2049, %v2037
    %v2374 = vpack.c.b16 %v2050, %v2038
    %v2375 = vpack.c.b16 %v2063, %v2051
    %v2376 = vpack.c.b16 %v2064, %v2052
    %v2377 = vpack.c.b16 %v2065, %v2053
    %v2378 = vpack.c.b16 %v2066, %v2054
    %v2379 = vpack.c.b16 %v2067, %v2055
    %v2380 = vpack.c.b16 %v2068, %v2056
    %v2381 = vpack.c.b16 %v2069, %v2057
    %v2382 = vpack.c.b16 %v2070, %v2058
    %v2383 = vpack.c.b16 %v2071, %v2059
    %v2384 = vpack.c.b16 %v2072, %v2060
    %v2385 = vpack.c.b16 %v2073, %v2061
    %v2386 = vpack.c.b16 %v2074, %v2062
    %v2387 = vpack.c.b16 %v2087, %v2075
    %v2388 = vpack.c.b16 %v2088, %v2076
    %v2389 = vpack.c.b16 %v2089, %v2077
    %v2390 = vpack.c.b16 %v2090, %v2078
    %v2391 = vpack.c.b16 %v2091, %v2079
    %v2392 = vpack.c.b16 %v2092, %v2080
    %v2393 = vpack.c.b16 %v2093, %v2081
    %v2394 = vpack.c.b16 %v2094, %v2082
    %v2395 = vpack.c.b16 %v2095, %v2083
    %v2396 = vpack.c.b16 %v2096, %v2084
    %v2397 = vpack.c.b16 %v2097, %v2085
    %v2398 = vpack.c.b16 %v2098, %v2086
    %v2399 = vpack.c.b16 %v2111, %v2099
    %v2400 = vpack.c.b16 %v2112, %v2100
    %v2401 = vpack.c.b16 %v2113, %v2101
    %v2402 = vpack.c.b16 %v2114, %v2102
    %v2403 = vpack.c.b16 %v2115, %v2103
    %v2404 = vpack.c.b16 %v2116, %v2104
    %v2405 = vpack.c.b16 %v2117, %v2105
    %v2406 = vpack.c.b16 %v2118, %v2106
    %v2407 = vpack.c.b16 %v2119, %v2107
    %v2408 = vpack.c.b16 %v2120, %v2108
    %v2409 = vpack.c.b16 %v2121, %v2109
    %v2410 = vpack.c.b16 %v2122, %v2110
    %v2411 = vpack.c.b16 %v2135, %v2123
    %v2412 = vpack.c.b16 %v2136, %v2124
    %v2413 = vpack.c.b16 %v2137, %v2125
    %v2414 = vpack.c.b16 %v2138, %v2126
    %v2415 = vpack.c.b16 %v2139, %v2127
    %v2416 = vpack.c.b16 %v2140, %v2128
    %v2417 = vpack.c.b16 %v2141, %v2129
    %v2418 = vpack.c.b16 %v2142, %v2130
    %v2419 = vpack.c.b16 %v2143, %v2131
    %v2420 = vpack.c.b16 %v2144, %v2132
    %v2421 = vpack.c.b16 %v2145, %v2133
    %v2422 = vpack.c.b16 %v2146, %v2134
    %v2423 = vpack.c.b16 %v2159, %v2147
    %v2424 = vpack.c.b16 %v2160, %v2148
    %v2425 = vpack.c.b16 %v2161, %v2149
    %v2426 = vpack.c.b16 %v2162, %v2150
    %v2427 = vpack.c.b16 %v2163, %v2151
    %v2428 = vpack.c.b16 %v2164, %v2152
    %v2429 = vpack.c.b16 %v2165, %v2153
    %v2430 = vpack.c.b16 %v2166, %v2154
    %v2431 = vpack.c.b16 %v2167, %v2155
    %v2432 = vpack.c.b16 %v2168, %v2156
    %v2433 = vpack.c.b16 %v2169, %v2157
    %v2434 = vpack.c.b16 %v2170, %v2158
    %v2435 = vpack.c.b16 %v2183, %v2171
    %v2436 = vpack.c.b16 %v2184, %v2172
    %v2437 = vpack.c.b16 %v2185, %v2173
    %v2438 = vpack.c.b16 %v2186, %v2174
    %v2439 = vpack.c.b16 %v2187, %v2175
    %v2440 = vpack.c.b16 %v2188, %v2176
    %v2441 = vpack.c.b16 %v2189, %v2177
    %v2442 = vpack.c.b16 %v2190, %v2178
    %v2443 = vpack.c.b16 %v2191, %v2179
    %v2444 = vpack.c.b16 %v2192, %v2180
    %v2445 = vpack.c.b16 %v2193, %v2181
    %v2446 = vpack.c.b16 %v2194, %v2182
    %v2447 = vpack.c.b16 %v2207, %v2195
    %v2448 = vpack.c.b16 %v2208, %v2196
    %v2449 = vpack.c.b16 %v2209, %v2197
    %v2450 = vpack.c.b16 %v2210, %v2198
    %v2451 = vpack.c.b16 %v2211, %v2199
    %v2452 = vpack.c.b16 %v2212, %v2200
    %v2453 = vpack.c.b16 %v2213, %v2201
    %v2454 = vpack.c.b16 %v2214, %v2202
    %v2455 = vpack.c.b16 %v2215, %v2203
    %v2456 = vpack.c.b16 %v2216, %v2204
    %v2457 = vpack.c.b16 %v2217, %v2205
    %v2458 = vpack.c.b16 %v2218, %v2206
    %v2459 = vpack.c.b16 %v2231, %v2219
    %v2460 = vpack.c.b16 %v2232, %v2220
    %v2461 = vpack.c.b16 %v2233, %v2221
    %v2462 = vpack.c.b16 %v2234, %v2222
    %v2463 = vpack.c.b16 %v2235, %v2223
    %v2464 = vpack.c.b16 %v2236, %v2224
    %v2465 = vpack.c.b16 %v2237, %v2225
    %v2466 = vpack.c.b16 %v2238, %v2226
    %v2467 = vpack.c.b16 %v2239, %v2227
    %v2468 = vpack.c.b16 %v2240, %v2228
    %v2469 = vpack.c.b16 %v2241, %v2229
    %v2470 = vpack.c.b16 %v2242, %v2230
    %v2471 = vpack.c.b16 %v2255, %v2243
    %v2472 = vpack.c.b16 %v2256, %v2244
    %v2473 = vpack.c.b16 %v2257, %v2245
    %v2474 = vpack.c.b16 %v2258, %v2246
    %v2475 = vpack.c.b16 %v2259, %v2247
    %v2476 = vpack.c.b16 %v2260, %v2248
    %v2477 = vpack.c.b16 %v2261, %v2249
    %v2478 = vpack.c.b16 %v2262, %v2250
    %v2479 = vpack.c.b16 %v2263, %v2251
    %v2480 = vpack.c.b16 %v2264, %v2252
    %v2481 = vpack.c.b16 %v2265, %v2253
    %v2482 = vpack.c.b16 %v2266, %v2254
    %v2483 = vpack.c.b16 %v2279, %v2267
    %v2484 = vpack.c.b16 %v2280, %v2268
    %v2485 = vpack.c.b16 %v2281, %v2269
    %v2486 = vpack.c.b16 %v2282, %v2270
    %v2487 = vpack.c.b16 %v2283, %v2271
    %v2488 = vpack.c.b16 %v2284, %v2272
    %v2489 = vpack.c.b16 %v2285, %v2273
    %v2490 = vpack.c.b16 %v2286, %v2274
    %v2491 = vpack.c.b16 %v2287, %v2275
    %v2492 = vpack.c.b16 %v2288, %v2276
    %v2493 = vpack.c.b16 %v2289, %v2277
    %v2494 = vpack.c.b16 %v2290, %v2278
    %v2495 = vpack.c.b16 %v2303, %v2291
    %v2496 = vpack.c.b16 %v2304, %v2292
    %v2497 = vpack.c.b16 %v2305, %v2293
    %v2498 = vpack.c.b16 %v2306, %v2294
    %v2499 = vpack.c.b16 %v2307, %v2295
    %v2500 = vpack.c.b16 %v2308, %v2296
    %v2501 = vpack.c.b16 %v2309, %v2297
    %v2502 = vpack.c.b16 %v2310, %v2298
    %v2503 = vpack.c.b16 %v2311, %v2299
    %v2504 = vpack.c.b16 %v2312, %v2300
    %v2505 = vpack.c.b16 %v2313, %v2301
    %v2506 = vpack.c.b16 %v2314, %v2302
    %2699 = vmatpush.bf16.msra.mxu0 %v2399
    %2700 = vmatpush.bf16.msra.mxu0 %v2387
    %2701 = vmatpush.bf16.msra.mxu0 %v2375
    %2702 = vmatpush.bf16.msra.mxu0 %v2363
    %2703 = vmatpush.bf16.msra.mxu0 %v2351
    %2704 = vmatpush.bf16.msra.mxu0 %v2339
    %2705 = vmatpush.bf16.msra.mxu0 %v2327
    %2706 = vmatpush.bf16.msra.mxu0 %v2315
    %2707 = vmatmul.bf16.gmra.mxu0 %v79
    %v2708 = vpop.f32.mrf.mxu0
    %v2709 = vadd.f32 %v1450, %v2708
    %v2710 = vpop.f32.mrf.mxu0
    %2711 = vdwg.mxu0
    %2712 = vmatpush.bf16.msra.mxu0 %v2495
    %2713 = vmatpush.bf16.msra.mxu0 %v2483
    %2714 = vmatpush.bf16.msra.mxu0 %v2471
    %2715 = vmatpush.bf16.msra.mxu0 %v2459
    %2716 = vmatpush.bf16.msra.mxu0 %v2447
    %2717 = vmatpush.bf16.msra.mxu0 %v2435
    %2718 = vmatpush.bf16.msra.mxu0 %v2423
    %2719 = vmatpush.bf16.msra.mxu0 %v2411
    %2720 = vmatmul.bf16.gmra.mxu0 %v80
    %v2721 = vpop.f32.mrf.mxu0
    %v2722 = vadd.f32 %v2709, %v2721
    %v2723 = vpop.f32.mrf.mxu0
    %2724 = vdwg.mxu0
    %2725 = vmatpush.bf16.msra.mxu0 %v2400
    %2726 = vmatpush.bf16.msra.mxu0 %v2388
    %2727 = vmatpush.bf16.msra.mxu0 %v2376
    %2728 = vmatpush.bf16.msra.mxu0 %v2364
    %2729 = vmatpush.bf16.msra.mxu0 %v2352
    %2730 = vmatpush.bf16.msra.mxu0 %v2340
    %2731 = vmatpush.bf16.msra.mxu0 %v2328
    %2732 = vmatpush.bf16.msra.mxu0 %v2316
    %2733 = vmatmul.bf16.gmra.mxu0 %v79
    %v2734 = vpop.f32.mrf.mxu0
    %v2735 = vadd.f32 %v1476, %v2734
    %v2736 = vpop.f32.mrf.mxu0
    %2737 = vdwg.mxu0
    %2738 = vmatpush.bf16.msra.mxu0 %v2496
    %2739 = vmatpush.bf16.msra.mxu0 %v2484
    %2740 = vmatpush.bf16.msra.mxu0 %v2472
    %2741 = vmatpush.bf16.msra.mxu0 %v2460
    %2742 = vmatpush.bf16.msra.mxu0 %v2448
    %2743 = vmatpush.bf16.msra.mxu0 %v2436
    %2744 = vmatpush.bf16.msra.mxu0 %v2424
    %2745 = vmatpush.bf16.msra.mxu0 %v2412
    %2746 = vmatmul.bf16.gmra.mxu0 %v80
    %v2747 = vpop.f32.mrf.mxu0
    %v2748 = vadd.f32 %v2735, %v2747
    %v2749 = vpop.f32.mrf.mxu0
    %2750 = vdwg.mxu0
    %2751 = vmatpush.bf16.msra.mxu0 %v2401
    %2752 = vmatpush.bf16.msra.mxu0 %v2389
    %2753 = vmatpush.bf16.msra.mxu0 %v2377
    %2754 = vmatpush.bf16.msra.mxu0 %v2365
    %2755 = vmatpush.bf16.msra.mxu0 %v2353
    %2756 = vmatpush.bf16.msra.mxu0 %v2341
    %2757 = vmatpush.bf16.msra.mxu0 %v2329
    %2758 = vmatpush.bf16.msra.mxu0 %v2317
    %2759 = vmatmul.bf16.gmra.mxu0 %v79
    %v2760 = vpop.f32.mrf.mxu0
    %v2761 = vadd.f32 %v1502, %v2760
    %v2762 = vpop.f32.mrf.mxu0
    %2763 = vdwg.mxu0
    %2764 = vmatpush.bf16.msra.mxu0 %v2497
    %2765 = vmatpush.bf16.msra.mxu0 %v2485
    %2766 = vmatpush.bf16.msra.mxu0 %v2473
    %2767 = vmatpush.bf16.msra.mxu0 %v2461
    %2768 = vmatpush.bf16.msra.mxu0 %v2449
    %2769 = vmatpush.bf16.msra.mxu0 %v2437
    %2770 = vmatpush.bf16.msra.mxu0 %v2425
    %2771 = vmatpush.bf16.msra.mxu0 %v2413
    %2772 = vmatmul.bf16.gmra.mxu0 %v80
    %v2773 = vpop.f32.mrf.mxu0
    %v2774 = vadd.f32 %v2761, %v2773
    %v2775 = vpop.f32.mrf.mxu0
    %2776 = vdwg.mxu0
    %2777 = vmatpush.bf16.msra.mxu0 %v2402
    %2778 = vmatpush.bf16.msra.mxu0 %v2390
    %2779 = vmatpush.bf16.msra.mxu0 %v2378
    %2780 = vmatpush.bf16.msra.mxu0 %v2366
    %2781 = vmatpush.bf16.msra.mxu0 %v2354
    %2782 = vmatpush.bf16.msra.mxu0 %v2342
    %2783 = vmatpush.bf16.msra.mxu0 %v2330
    %2784 = vmatpush.bf16.msra.mxu0 %v2318
    %2785 = vmatmul.bf16.gmra.mxu0 %v79
    %v2786 = vpop.f32.mrf.mxu0
    %v2787 = vadd.f32 %v1528, %v2786
    %v2788 = vpop.f32.mrf.mxu0
    %2789 = vdwg.mxu0
    %2790 = vmatpush.bf16.msra.mxu0 %v2498
    %2791 = vmatpush.bf16.msra.mxu0 %v2486
    %2792 = vmatpush.bf16.msra.mxu0 %v2474
    %2793 = vmatpush.bf16.msra.mxu0 %v2462
    %2794 = vmatpush.bf16.msra.mxu0 %v2450
    %2795 = vmatpush.bf16.msra.mxu0 %v2438
    %2796 = vmatpush.bf16.msra.mxu0 %v2426
    %2797 = vmatpush.bf16.msra.mxu0 %v2414
    %2798 = vmatmul.bf16.gmra.mxu0 %v80
    %v2799 = vpop.f32.mrf.mxu0
    %v2800 = vadd.f32 %v2787, %v2799
    %v2801 = vpop.f32.mrf.mxu0
    %2802 = vdwg.mxu0
    %2803 = vmatpush.bf16.msra.mxu0 %v2403
    %2804 = vmatpush.bf16.msra.mxu0 %v2391
    %2805 = vmatpush.bf16.msra.mxu0 %v2379
    %2806 = vmatpush.bf16.msra.mxu0 %v2367
    %2807 = vmatpush.bf16.msra.mxu0 %v2355
    %2808 = vmatpush.bf16.msra.mxu0 %v2343
    %2809 = vmatpush.bf16.msra.mxu0 %v2331
    %2810 = vmatpush.bf16.msra.mxu0 %v2319
    %2811 = vmatmul.bf16.gmra.mxu0 %v79
    %v2812 = vpop.f32.mrf.mxu0
    %v2813 = vadd.f32 %v1554, %v2812
    %v2814 = vpop.f32.mrf.mxu0
    %2815 = vdwg.mxu0
    %2816 = vmatpush.bf16.msra.mxu0 %v2499
    %2817 = vmatpush.bf16.msra.mxu0 %v2487
    %2818 = vmatpush.bf16.msra.mxu0 %v2475
    %2819 = vmatpush.bf16.msra.mxu0 %v2463
    %2820 = vmatpush.bf16.msra.mxu0 %v2451
    %2821 = vmatpush.bf16.msra.mxu0 %v2439
    %2822 = vmatpush.bf16.msra.mxu0 %v2427
    %2823 = vmatpush.bf16.msra.mxu0 %v2415
    %2824 = vmatmul.bf16.gmra.mxu0 %v80
    %v2825 = vpop.f32.mrf.mxu0
    %v2826 = vadd.f32 %v2813, %v2825
    %v2827 = vpop.f32.mrf.mxu0
    %2828 = vdwg.mxu0
    %2829 = vmatpush.bf16.msra.mxu0 %v2404
    %2830 = vmatpush.bf16.msra.mxu0 %v2392
    %2831 = vmatpush.bf16.msra.mxu0 %v2380
    %2832 = vmatpush.bf16.msra.mxu0 %v2368
    %2833 = vmatpush.bf16.msra.mxu0 %v2356
    %2834 = vmatpush.bf16.msra.mxu0 %v2344
    %2835 = vmatpush.bf16.msra.mxu0 %v2332
    %2836 = vmatpush.bf16.msra.mxu0 %v2320
    %2837 = vmatmul.bf16.gmra.mxu0 %v79
    %v2838 = vpop.f32.mrf.mxu0
    %v2839 = vadd.f32 %v1580, %v2838
    %v2840 = vpop.f32.mrf.mxu0
    %2841 = vdwg.mxu0
    %2842 = vmatpush.bf16.msra.mxu0 %v2500
    %2843 = vmatpush.bf16.msra.mxu0 %v2488
    %2844 = vmatpush.bf16.msra.mxu0 %v2476
    %2845 = vmatpush.bf16.msra.mxu0 %v2464
    %2846 = vmatpush.bf16.msra.mxu0 %v2452
    %2847 = vmatpush.bf16.msra.mxu0 %v2440
    %2848 = vmatpush.bf16.msra.mxu0 %v2428
    %2849 = vmatpush.bf16.msra.mxu0 %v2416
    %2850 = vmatmul.bf16.gmra.mxu0 %v80
    %v2851 = vpop.f32.mrf.mxu0
    %v2852 = vadd.f32 %v2839, %v2851
    %v2853 = vpop.f32.mrf.mxu0
    %2854 = vdwg.mxu0
    %2855 = vmatpush.bf16.msra.mxu0 %v2405
    %2856 = vmatpush.bf16.msra.mxu0 %v2393
    %2857 = vmatpush.bf16.msra.mxu0 %v2381
    %2858 = vmatpush.bf16.msra.mxu0 %v2369
    %2859 = vmatpush.bf16.msra.mxu0 %v2357
    %2860 = vmatpush.bf16.msra.mxu0 %v2345
    %2861 = vmatpush.bf16.msra.mxu0 %v2333
    %2862 = vmatpush.bf16.msra.mxu0 %v2321
    %2863 = vmatmul.bf16.gmra.mxu0 %v79
    %v2864 = vpop.f32.mrf.mxu0
    %v2865 = vadd.f32 %v1606, %v2864
    %v2866 = vpop.f32.mrf.mxu0
    %2867 = vdwg.mxu0
    %2868 = vmatpush.bf16.msra.mxu0 %v2501
    %2869 = vmatpush.bf16.msra.mxu0 %v2489
    %2870 = vmatpush.bf16.msra.mxu0 %v2477
    %2871 = vmatpush.bf16.msra.mxu0 %v2465
    %2872 = vmatpush.bf16.msra.mxu0 %v2453
    %2873 = vmatpush.bf16.msra.mxu0 %v2441
    %2874 = vmatpush.bf16.msra.mxu0 %v2429
    %2875 = vmatpush.bf16.msra.mxu0 %v2417
    %2876 = vmatmul.bf16.gmra.mxu0 %v80
    %v2877 = vpop.f32.mrf.mxu0
    %v2878 = vadd.f32 %v2865, %v2877
    %v2879 = vpop.f32.mrf.mxu0
    %2880 = vdwg.mxu0
    %2881 = vmatpush.bf16.msra.mxu0 %v2406
    %2882 = vmatpush.bf16.msra.mxu0 %v2394
    %2883 = vmatpush.bf16.msra.mxu0 %v2382
    %2884 = vmatpush.bf16.msra.mxu0 %v2370
    %2885 = vmatpush.bf16.msra.mxu0 %v2358
    %2886 = vmatpush.bf16.msra.mxu0 %v2346
    %2887 = vmatpush.bf16.msra.mxu0 %v2334
    %2888 = vmatpush.bf16.msra.mxu0 %v2322
    %2889 = vmatmul.bf16.gmra.mxu0 %v79
    %v2890 = vpop.f32.mrf.mxu0
    %v2891 = vadd.f32 %v1632, %v2890
    %v2892 = vpop.f32.mrf.mxu0
    %2893 = vdwg.mxu0
    %2894 = vmatpush.bf16.msra.mxu0 %v2502
    %2895 = vmatpush.bf16.msra.mxu0 %v2490
    %2896 = vmatpush.bf16.msra.mxu0 %v2478
    %2897 = vmatpush.bf16.msra.mxu0 %v2466
    %2898 = vmatpush.bf16.msra.mxu0 %v2454
    %2899 = vmatpush.bf16.msra.mxu0 %v2442
    %2900 = vmatpush.bf16.msra.mxu0 %v2430
    %2901 = vmatpush.bf16.msra.mxu0 %v2418
    %2902 = vmatmul.bf16.gmra.mxu0 %v80
    %v2903 = vpop.f32.mrf.mxu0
    %v2904 = vadd.f32 %v2891, %v2903
    %v2905 = vpop.f32.mrf.mxu0
    %2906 = vdwg.mxu0
    %2907 = vmatpush.bf16.msra.mxu0 %v2407
    %2908 = vmatpush.bf16.msra.mxu0 %v2395
    %2909 = vmatpush.bf16.msra.mxu0 %v2383
    %2910 = vmatpush.bf16.msra.mxu0 %v2371
    %2911 = vmatpush.bf16.msra.mxu0 %v2359
    %2912 = vmatpush.bf16.msra.mxu0 %v2347
    %2913 = vmatpush.bf16.msra.mxu0 %v2335
    %2914 = vmatpush.bf16.msra.mxu0 %v2323
    %2915 = vmatmul.bf16.gmra.mxu0 %v79
    %v2916 = vpop.f32.mrf.mxu0
    %v2917 = vadd.f32 %v1658, %v2916
    %v2918 = vpop.f32.mrf.mxu0
    %2919 = vdwg.mxu0
    %2920 = vmatpush.bf16.msra.mxu0 %v2503
    %2921 = vmatpush.bf16.msra.mxu0 %v2491
    %2922 = vmatpush.bf16.msra.mxu0 %v2479
    %2923 = vmatpush.bf16.msra.mxu0 %v2467
    %2924 = vmatpush.bf16.msra.mxu0 %v2455
    %2925 = vmatpush.bf16.msra.mxu0 %v2443
    %2926 = vmatpush.bf16.msra.mxu0 %v2431
    %2927 = vmatpush.bf16.msra.mxu0 %v2419
    %2928 = vmatmul.bf16.gmra.mxu0 %v80
    %v2929 = vpop.f32.mrf.mxu0
    %v2930 = vadd.f32 %v2917, %v2929
    %v2931 = vpop.f32.mrf.mxu0
    %2932 = vdwg.mxu0
    %2933 = vmatpush.bf16.msra.mxu0 %v2408
    %2934 = vmatpush.bf16.msra.mxu0 %v2396
    %2935 = vmatpush.bf16.msra.mxu0 %v2384
    %2936 = vmatpush.bf16.msra.mxu0 %v2372
    %2937 = vmatpush.bf16.msra.mxu0 %v2360
    %2938 = vmatpush.bf16.msra.mxu0 %v2348
    %2939 = vmatpush.bf16.msra.mxu0 %v2336
    %2940 = vmatpush.bf16.msra.mxu0 %v2324
    %2941 = vmatmul.bf16.gmra.mxu0 %v79
    %v2942 = vpop.f32.mrf.mxu0
    %v2943 = vadd.f32 %v1684, %v2942
    %v2944 = vpop.f32.mrf.mxu0
    %2945 = vdwg.mxu0
    %2946 = vmatpush.bf16.msra.mxu0 %v2504
    %2947 = vmatpush.bf16.msra.mxu0 %v2492
    %2948 = vmatpush.bf16.msra.mxu0 %v2480
    %2949 = vmatpush.bf16.msra.mxu0 %v2468
    %2950 = vmatpush.bf16.msra.mxu0 %v2456
    %2951 = vmatpush.bf16.msra.mxu0 %v2444
    %2952 = vmatpush.bf16.msra.mxu0 %v2432
    %2953 = vmatpush.bf16.msra.mxu0 %v2420
    %2954 = vmatmul.bf16.gmra.mxu0 %v80
    %v2955 = vpop.f32.mrf.mxu0
    %v2956 = vadd.f32 %v2943, %v2955
    %v2957 = vpop.f32.mrf.mxu0
    %2958 = vdwg.mxu0
    %2959 = vmatpush.bf16.msra.mxu0 %v2409
    %2960 = vmatpush.bf16.msra.mxu0 %v2397
    %2961 = vmatpush.bf16.msra.mxu0 %v2385
    %2962 = vmatpush.bf16.msra.mxu0 %v2373
    %2963 = vmatpush.bf16.msra.mxu0 %v2361
    %2964 = vmatpush.bf16.msra.mxu0 %v2349
    %2965 = vmatpush.bf16.msra.mxu0 %v2337
    %2966 = vmatpush.bf16.msra.mxu0 %v2325
    %2967 = vmatmul.bf16.gmra.mxu0 %v79
    %v2968 = vpop.f32.mrf.mxu0
    %v2969 = vadd.f32 %v1710, %v2968
    %v2970 = vpop.f32.mrf.mxu0
    %2971 = vdwg.mxu0
    %2972 = vmatpush.bf16.msra.mxu0 %v2505
    %2973 = vmatpush.bf16.msra.mxu0 %v2493
    %2974 = vmatpush.bf16.msra.mxu0 %v2481
    %2975 = vmatpush.bf16.msra.mxu0 %v2469
    %2976 = vmatpush.bf16.msra.mxu0 %v2457
    %2977 = vmatpush.bf16.msra.mxu0 %v2445
    %2978 = vmatpush.bf16.msra.mxu0 %v2433
    %2979 = vmatpush.bf16.msra.mxu0 %v2421
    %2980 = vmatmul.bf16.gmra.mxu0 %v80
    %v2981 = vpop.f32.mrf.mxu0
    %v2982 = vadd.f32 %v2969, %v2981
    %v2983 = vpop.f32.mrf.mxu0
    %2984 = vdwg.mxu0
    %2985 = vmatpush.bf16.msra.mxu0 %v2410
    %2986 = vmatpush.bf16.msra.mxu0 %v2398
    %2987 = vmatpush.bf16.msra.mxu0 %v2386
    %2988 = vmatpush.bf16.msra.mxu0 %v2374
    %2989 = vmatpush.bf16.msra.mxu0 %v2362
    %2990 = vmatpush.bf16.msra.mxu0 %v2350
    %2991 = vmatpush.bf16.msra.mxu0 %v2338
    %2992 = vmatpush.bf16.msra.mxu0 %v2326
    %2993 = vmatmul.bf16.gmra.mxu0 %v79
    %v2994 = vpop.f32.mrf.mxu0
    %v2995 = vadd.f32 %v1736, %v2994
    %v2996 = vpop.f32.mrf.mxu0
    %2997 = vdwg.mxu0
    %2998 = vmatpush.bf16.msra.mxu0 %v2506
    %2999 = vmatpush.bf16.msra.mxu0 %v2494
    %3000 = vmatpush.bf16.msra.mxu0 %v2482
    %3001 = vmatpush.bf16.msra.mxu0 %v2470
    %3002 = vmatpush.bf16.msra.mxu0 %v2458
    %3003 = vmatpush.bf16.msra.mxu0 %v2446
    %3004 = vmatpush.bf16.msra.mxu0 %v2434
    %3005 = vmatpush.bf16.msra.mxu0 %v2422
    %3006 = vmatmul.bf16.gmra.mxu0 %v80
    %v3007 = vpop.f32.mrf.mxu0
    %v3008 = vadd.f32 %v2995, %v3007
    %v3009 = vpop.f32.mrf.mxu0
    %3010 = vdwg.mxu0
    %v3011 = vld [vmem:[#allocation8] ss:$8 sm:$0xf]
    %v3012 = vld [vmem:[#allocation8] ss:$8 sm:$0xf0]
    %v3013 = vor.u32 %v3011, %v3012
    %s3014 = scalar_lea.vmem [#allocation8], 1
    %v3015 = vld [vmem:[%s3014] ss:$8 sm:$0xf]
    %v3016 = vld [vmem:[%s3014] ss:$8 sm:$0xf0]
    %v3017 = vor.u32 %v3015, %v3016
    %s3018 = scalar_lea.vmem [#allocation8], 2
    %v3019 = vld [vmem:[%s3018] ss:$8 sm:$0xf]
    %v3020 = vld [vmem:[%s3018] ss:$8 sm:$0xf0]
    %v3021 = vor.u32 %v3019, %v3020
    %s3022 = scalar_lea.vmem [#allocation8], 3
    %v3023 = vld [vmem:[%s3022] ss:$8 sm:$0xf]
    %v3024 = vld [vmem:[%s3022] ss:$8 sm:$0xf0]
    %v3025 = vor.u32 %v3023, %v3024
    %s3026 = scalar_lea.vmem [#allocation8], 4
    %v3027 = vld [vmem:[%s3026] ss:$8 sm:$0xf]
    %s3028 = scalar_lea.vmem [#allocation8], 5
    %v3029 = vld [vmem:[%s3028] ss:$8 sm:$0xf]
    %s3030 = scalar_lea.vmem [#allocation8], 6
    %v3031 = vld [vmem:[%s3030] ss:$8 sm:$0xf]
    %v3032 = vld [vmem:[#allocation8 + $0x7] ss:$0 sm:$0xff]
    %v3034 = vperm.slane %v3013, 0
    %v3035 = vperm.slane %v3013, 1
    %v3036 = vperm.slane %v3013, 2
    %v3037 = vperm.slane %v3013, 3
    %v3038 = vperm.slane %v3013, 4
    %v3039 = vperm.slane %v3013, 5
    %v3040 = vperm.slane %v3013, 6
    %v3041 = vperm.slane %v3013, 7
    %v3050 = vadd.f32 %v2722, %v3034
    %v3051 = vadd.f32 %v2748, %v3035
    %v3052 = vadd.f32 %v2774, %v3036
    %v3053 = vadd.f32 %v2800, %v3037
    %v3054 = vadd.f32 %v2826, %v3038
    %v3055 = vadd.f32 %v2852, %v3039
    %v3056 = vadd.f32 %v2878, %v3040
    %v3057 = vadd.f32 %v2904, %v3041
    %v3058 = vrot.slane %v3050, 4
    %v3059 = vadd.f32 %v3050, %v3058
    %v3060 = vrot.slane %v3059, 2
    %v3061 = vadd.f32 %v3059, %v3060
    %v3062 = vrot.slane %v3061, 1
    %v3063 = vadd.f32 %v3061, %v3062
    %v3064 = vrot.slane %v3051, 4
    %v3065 = vadd.f32 %v3051, %v3064
    %v3066 = vrot.slane %v3065, 2
    %v3067 = vadd.f32 %v3065, %v3066
    %v3068 = vrot.slane %v3067, 1
    %v3069 = vadd.f32 %v3067, %v3068
    %v3070 = vrot.slane %v3052, 4
    %v3071 = vadd.f32 %v3052, %v3070
    %v3072 = vrot.slane %v3071, 2
    %v3073 = vadd.f32 %v3071, %v3072
    %v3074 = vrot.slane %v3073, 1
    %v3075 = vadd.f32 %v3073, %v3074
    %v3076 = vrot.slane %v3053, 4
    %v3077 = vadd.f32 %v3053, %v3076
    %v3078 = vrot.slane %v3077, 2
    %v3079 = vadd.f32 %v3077, %v3078
    %v3080 = vrot.slane %v3079, 1
    %v3081 = vadd.f32 %v3079, %v3080
    %v3082 = vrot.slane %v3054, 4
    %v3083 = vadd.f32 %v3054, %v3082
    %v3084 = vrot.slane %v3083, 2
    %v3085 = vadd.f32 %v3083, %v3084
    %v3086 = vrot.slane %v3085, 1
    %v3087 = vadd.f32 %v3085, %v3086
    %v3088 = vrot.slane %v3055, 4
    %v3089 = vadd.f32 %v3055, %v3088
    %v3090 = vrot.slane %v3089, 2
    %v3091 = vadd.f32 %v3089, %v3090
    %v3092 = vrot.slane %v3091, 1
    %v3093 = vadd.f32 %v3091, %v3092
    %v3094 = vrot.slane %v3056, 4
    %v3095 = vadd.f32 %v3056, %v3094
    %v3096 = vrot.slane %v3095, 2
    %v3097 = vadd.f32 %v3095, %v3096
    %v3098 = vrot.slane %v3097, 1
    %v3099 = vadd.f32 %v3097, %v3098
    %v3100 = vrot.slane %v3057, 4
    %v3101 = vadd.f32 %v3057, %v3100
    %v3102 = vrot.slane %v3101, 2
    %v3103 = vadd.f32 %v3101, %v3102
    %v3104 = vrot.slane %v3103, 1
    %v3105 = vadd.f32 %v3103, %v3104
    %v3106 = vrcp.pop 8.0
    %v3107 = vmul.f32 8.0, %v3106
    %v3108 = vsub.f32 1.0, %v3107
    %v3109 = vmul.f32 %v3106, %v3108
    %v3110 = vadd.f32 %v3106, %v3109
    %vm3111 = vweird.f32 %v3106
    %v3112 = vsel %vm3111, %v3106, %v3110
    %v3113 = vmul.f32 %v3063, %v3112
    %v3114 = vmul.f32 %v3069, %v3112
    %v3115 = vmul.f32 %v3075, %v3112
    %v3116 = vmul.f32 %v3081, %v3112
    %v3117 = vmul.f32 %v3087, %v3112
    %v3118 = vmul.f32 %v3093, %v3112
    %v3119 = vmul.f32 %v3099, %v3112
    %v3120 = vmul.f32 %v3105, %v3112
    %v3121 = vsub.f32 %v3050, %v3113
    %v3122 = vsub.f32 %v3051, %v3114
    %v3123 = vsub.f32 %v3052, %v3115
    %v3124 = vsub.f32 %v3053, %v3116
    %v3125 = vsub.f32 %v3054, %v3117
    %v3126 = vsub.f32 %v3055, %v3118
    %v3127 = vsub.f32 %v3056, %v3119
    %v3128 = vsub.f32 %v3057, %v3120
    %v3129 = vmul.f32 %v3121, %v3121
    %v3130 = vmul.f32 %v3122, %v3122
    %v3131 = vmul.f32 %v3123, %v3123
    %v3132 = vmul.f32 %v3124, %v3124
    %v3133 = vmul.f32 %v3125, %v3125
    %v3134 = vmul.f32 %v3126, %v3126
    %v3135 = vmul.f32 %v3127, %v3127
    %v3136 = vmul.f32 %v3128, %v3128
    %v3137 = vrot.slane %v3129, 4
    %v3138 = vadd.f32 %v3129, %v3137
    %v3139 = vrot.slane %v3138, 2
    %v3140 = vadd.f32 %v3138, %v3139
    %v3141 = vrot.slane %v3140, 1
    %v3142 = vadd.f32 %v3140, %v3141
    %v3143 = vrot.slane %v3130, 4
    %v3144 = vadd.f32 %v3130, %v3143
    %v3145 = vrot.slane %v3144, 2
    %v3146 = vadd.f32 %v3144, %v3145
    %v3147 = vrot.slane %v3146, 1
    %v3148 = vadd.f32 %v3146, %v3147
    %v3149 = vrot.slane %v3131, 4
    %v3150 = vadd.f32 %v3131, %v3149
    %v3151 = vrot.slane %v3150, 2
    %v3152 = vadd.f32 %v3150, %v3151
    %v3153 = vrot.slane %v3152, 1
    %v3154 = vadd.f32 %v3152, %v3153
    %v3155 = vrot.slane %v3132, 4
    %v3156 = vadd.f32 %v3132, %v3155
    %v3157 = vrot.slane %v3156, 2
    %v3158 = vadd.f32 %v3156, %v3157
    %v3159 = vrot.slane %v3158, 1
    %v3160 = vadd.f32 %v3158, %v3159
    %v3161 = vrot.slane %v3133, 4
    %v3162 = vadd.f32 %v3133, %v3161
    %v3163 = vrot.slane %v3162, 2
    %v3164 = vadd.f32 %v3162, %v3163
    %v3165 = vrot.slane %v3164, 1
    %v3166 = vadd.f32 %v3164, %v3165
    %v3167 = vrot.slane %v3134, 4
    %v3168 = vadd.f32 %v3134, %v3167
    %v3169 = vrot.slane %v3168, 2
    %v3170 = vadd.f32 %v3168, %v3169
    %v3171 = vrot.slane %v3170, 1
    %v3172 = vadd.f32 %v3170, %v3171
    %v3173 = vrot.slane %v3135, 4
    %v3174 = vadd.f32 %v3135, %v3173
    %v3175 = vrot.slane %v3174, 2
    %v3176 = vadd.f32 %v3174, %v3175
    %v3177 = vrot.slane %v3176, 1
    %v3178 = vadd.f32 %v3176, %v3177
    %v3179 = vrot.slane %v3136, 4
    %v3180 = vadd.f32 %v3136, %v3179
    %v3181 = vrot.slane %v3180, 2
    %v3182 = vadd.f32 %v3180, %v3181
    %v3183 = vrot.slane %v3182, 1
    %v3184 = vadd.f32 %v3182, %v3183
    %v3185 = vmul.f32 %v3142, %v3112
    %v3186 = vmul.f32 %v3148, %v3112
    %v3187 = vmul.f32 %v3154, %v3112
    %v3188 = vmul.f32 %v3160, %v3112
    %v3189 = vmul.f32 %v3166, %v3112
    %v3190 = vmul.f32 %v3172, %v3112
    %v3191 = vmul.f32 %v3178, %v3112
    %v3192 = vmul.f32 %v3184, %v3112
    %v3193 = vadd.f32 %v3185, 1e-05
    %v3194 = vadd.f32 %v3186, 1e-05
    %v3195 = vadd.f32 %v3187, 1e-05
    %v3196 = vadd.f32 %v3188, 1e-05
    %v3197 = vadd.f32 %v3189, 1e-05
    %v3198 = vadd.f32 %v3190, 1e-05
    %v3199 = vadd.f32 %v3191, 1e-05
    %v3200 = vadd.f32 %v3192, 1e-05
    %v3201 = vrsqrt.pop %v3193
    %v3202 = vmul.f32 %v3201, %v3193
    %v3203 = vmul.f32 %v3202, %v3201
    %v3204 = vmul.f32 0.5, %v3203
    %v3205 = vsub.f32 1.5, %v3204
    %v3206 = vmul.f32 %v3201, %v3205
    %vm3207 = vweird.f32 %v3193
    %vm3208 = vweird.f32 %v3201
    %vm3209 = vmor %vm3207, %vm3208
    %v3210 = vsel %vm3209, %v3201, %v3206
    %v3211 = vrsqrt.pop %v3194
    %v3212 = vmul.f32 %v3211, %v3194
    %v3213 = vmul.f32 %v3212, %v3211
    %v3214 = vmul.f32 0.5, %v3213
    %v3215 = vsub.f32 1.5, %v3214
    %v3216 = vmul.f32 %v3211, %v3215
    %vm3217 = vweird.f32 %v3194
    %vm3218 = vweird.f32 %v3211
    %vm3219 = vmor %vm3217, %vm3218
    %v3220 = vsel %vm3219, %v3211, %v3216
    %v3221 = vrsqrt.pop %v3195
    %v3222 = vmul.f32 %v3221, %v3195
    %v3223 = vmul.f32 %v3222, %v3221
    %v3224 = vmul.f32 0.5, %v3223
    %v3225 = vsub.f32 1.5, %v3224
    %v3226 = vmul.f32 %v3221, %v3225
    %vm3227 = vweird.f32 %v3195
    %vm3228 = vweird.f32 %v3221
    %vm3229 = vmor %vm3227, %vm3228
    %v3230 = vsel %vm3229, %v3221, %v3226
    %v3231 = vrsqrt.pop %v3196
    %v3232 = vmul.f32 %v3231, %v3196
    %v3233 = vmul.f32 %v3232, %v3231
    %v3234 = vmul.f32 0.5, %v3233
    %v3235 = vsub.f32 1.5, %v3234
    %v3236 = vmul.f32 %v3231, %v3235
    %vm3237 = vweird.f32 %v3196
    %vm3238 = vweird.f32 %v3231
    %vm3239 = vmor %vm3237, %vm3238
    %v3240 = vsel %vm3239, %v3231, %v3236
    %v3241 = vrsqrt.pop %v3197
    %v3242 = vmul.f32 %v3241, %v3197
    %v3243 = vmul.f32 %v3242, %v3241
    %v3244 = vmul.f32 0.5, %v3243
    %v3245 = vsub.f32 1.5, %v3244
    %v3246 = vmul.f32 %v3241, %v3245
    %vm3247 = vweird.f32 %v3197
    %vm3248 = vweird.f32 %v3241
    %vm3249 = vmor %vm3247, %vm3248
    %v3250 = vsel %vm3249, %v3241, %v3246
    %v3251 = vrsqrt.pop %v3198
    %v3252 = vmul.f32 %v3251, %v3198
    %v3253 = vmul.f32 %v3252, %v3251
    %v3254 = vmul.f32 0.5, %v3253
    %v3255 = vsub.f32 1.5, %v3254
    %v3256 = vmul.f32 %v3251, %v3255
    %vm3257 = vweird.f32 %v3198
    %vm3258 = vweird.f32 %v3251
    %vm3259 = vmor %vm3257, %vm3258
    %v3260 = vsel %vm3259, %v3251, %v3256
    %v3261 = vrsqrt.pop %v3199
    %v3262 = vmul.f32 %v3261, %v3199
    %v3263 = vmul.f32 %v3262, %v3261
    %v3264 = vmul.f32 0.5, %v3263
    %v3265 = vsub.f32 1.5, %v3264
    %v3266 = vmul.f32 %v3261, %v3265
    %vm3267 = vweird.f32 %v3199
    %vm3268 = vweird.f32 %v3261
    %vm3269 = vmor %vm3267, %vm3268
    %v3270 = vsel %vm3269, %v3261, %v3266
    %v3271 = vrsqrt.pop %v3200
    %v3272 = vmul.f32 %v3271, %v3200
    %v3273 = vmul.f32 %v3272, %v3271
    %v3274 = vmul.f32 0.5, %v3273
    %v3275 = vsub.f32 1.5, %v3274
    %v3276 = vmul.f32 %v3271, %v3275
    %vm3277 = vweird.f32 %v3200
    %vm3278 = vweird.f32 %v3271
    %vm3279 = vmor %vm3277, %vm3278
    %v3280 = vsel %vm3279, %v3271, %v3276
    %v3281 = vmul.f32 %v3121, %v3210
    %v3282 = vmul.f32 %v3122, %v3220
    %v3283 = vmul.f32 %v3123, %v3230
    %v3284 = vmul.f32 %v3124, %v3240
    %v3285 = vmul.f32 %v3125, %v3250
    %v3286 = vmul.f32 %v3126, %v3260
    %v3287 = vmul.f32 %v3127, %v3270
    %v3288 = vmul.f32 %v3128, %v3280
    %v3290 = vperm.slane %v3017, 0
    %v3291 = vperm.slane %v3017, 1
    %v3292 = vperm.slane %v3017, 2
    %v3293 = vperm.slane %v3017, 3
    %v3294 = vperm.slane %v3017, 4
    %v3295 = vperm.slane %v3017, 5
    %v3296 = vperm.slane %v3017, 6
    %v3297 = vperm.slane %v3017, 7
    %v3306 = vmul.f32 %v3281, %v3290
    %v3307 = vmul.f32 %v3282, %v3291
    %v3308 = vmul.f32 %v3283, %v3292
    %v3309 = vmul.f32 %v3284, %v3293
    %v3310 = vmul.f32 %v3285, %v3294
    %v3311 = vmul.f32 %v3286, %v3295
    %v3312 = vmul.f32 %v3287, %v3296
    %v3313 = vmul.f32 %v3288, %v3297
    %v3315 = vperm.slane %v3021, 0
    %v3316 = vperm.slane %v3021, 1
    %v3317 = vperm.slane %v3021, 2
    %v3318 = vperm.slane %v3021, 3
    %v3319 = vperm.slane %v3021, 4
    %v3320 = vperm.slane %v3021, 5
    %v3321 = vperm.slane %v3021, 6
    %v3322 = vperm.slane %v3021, 7
    %v3331 = vadd.f32 %v3306, %v3315
    %v3332 = vadd.f32 %v3307, %v3316
    %v3333 = vadd.f32 %v3308, %v3317
    %v3334 = vadd.f32 %v3309, %v3318
    %v3335 = vadd.f32 %v3310, %v3319
    %v3336 = vadd.f32 %v3311, %v3320
    %v3337 = vadd.f32 %v3312, %v3321
    %v3338 = vadd.f32 %v3313, %v3322
    %v3339 = vmax.f32 %v3331, 0.0
    %v3340 = vmax.f32 %v3332, 0.0
    %v3341 = vmax.f32 %v3333, 0.0
    %v3342 = vmax.f32 %v3334, 0.0
    %v3343 = vmax.f32 %v3335, 0.0
    %v3344 = vmax.f32 %v3336, 0.0
    %v3345 = vmax.f32 %v3337, 0.0
    %v3346 = vmax.f32 %v3338, 0.0
    %v3348 = vperm.slane %v3025, 0
    %v3349 = vperm.slane %v3025, 1
    %v3350 = vperm.slane %v3025, 2
    %v3351 = vperm.slane %v3025, 3
    %v3352 = vperm.slane %v3025, 4
    %v3353 = vperm.slane %v3025, 5
    %v3354 = vperm.slane %v3025, 6
    %v3355 = vperm.slane %v3025, 7
    %v3364 = vmul.f32 %v3339, %v3348
    %v3365 = vmul.f32 %v3340, %v3349
    %v3366 = vmul.f32 %v3341, %v3350
    %v3367 = vmul.f32 %v3342, %v3351
    %v3368 = vmul.f32 %v3343, %v3352
    %v3369 = vmul.f32 %v3344, %v3353
    %v3370 = vmul.f32 %v3345, %v3354
    %v3371 = vmul.f32 %v3346, %v3355
    %v3372 = vadd.f32 %v3364, %v3365
    %v3373 = vadd.f32 %v3372, %v3366
    %v3374 = vadd.f32 %v3373, %v3367
    %v3375 = vadd.f32 %v3374, %v3368
    %v3376 = vadd.f32 %v3375, %v3369
    %v3377 = vadd.f32 %v3376, %v3370
    %v3378 = vadd.f32 %v3377, %v3371
    %3379 = vadd.xlane.f32.xlu0 %v3378
    %v3380 = vpop.xlane.xlu0 %3379
    %v3381 = vadd.f32 %v3380, %v3032
    %v3382 = vsub.f32 0.0, %v3381
    %v3383 = vmul.f32 %v3382, 1.442695
    %v3384 = vpow.pop %v3383
    %v3385 = vadd.f32 %v3384, 1.0
    %v3386 = vrcp.pop %v3385
    %v3387 = vsub.f32 1.0, %v3386
    %v3389 = vperm.slane %v3027, 0
    %v3390 = vperm.slane %v3027, 1
    %v3391 = vperm.slane %v3027, 2
    %v3392 = vperm.slane %v3027, 3
    %v3397 = vadd.f32 %v2930, %v3389
    %v3398 = vadd.f32 %v2956, %v3390
    %v3399 = vadd.f32 %v2982, %v3391
    %v3400 = vadd.f32 %v3008, %v3392
    %v3401 = vrot.slane %v3397, 4
    %v3402 = vadd.f32 %v3397, %v3401
    %v3403 = vrot.slane %v3402, 2
    %v3404 = vadd.f32 %v3402, %v3403
    %v3405 = vrot.slane %v3404, 1
    %v3406 = vadd.f32 %v3404, %v3405
    %v3407 = vrot.slane %v3398, 4
    %v3408 = vadd.f32 %v3398, %v3407
    %v3409 = vrot.slane %v3408, 2
    %v3410 = vadd.f32 %v3408, %v3409
    %v3411 = vrot.slane %v3410, 1
    %v3412 = vadd.f32 %v3410, %v3411
    %v3413 = vrot.slane %v3399, 4
    %v3414 = vadd.f32 %v3399, %v3413
    %v3415 = vrot.slane %v3414, 2
    %v3416 = vadd.f32 %v3414, %v3415
    %v3417 = vrot.slane %v3416, 1
    %v3418 = vadd.f32 %v3416, %v3417
    %v3419 = vrot.slane %v3400, 4
    %v3420 = vadd.f32 %v3400, %v3419
    %v3421 = vrot.slane %v3420, 2
    %v3422 = vadd.f32 %v3420, %v3421
    %v3423 = vrot.slane %v3422, 1
    %v3424 = vadd.f32 %v3422, %v3423
    %v3425 = vmul.f32 %v3406, %v3112
    %v3426 = vmul.f32 %v3412, %v3112
    %v3427 = vmul.f32 %v3418, %v3112
    %v3428 = vmul.f32 %v3424, %v3112
    %v3429 = vsub.f32 %v3397, %v3425
    %v3430 = vsub.f32 %v3398, %v3426
    %v3431 = vsub.f32 %v3399, %v3427
    %v3432 = vsub.f32 %v3400, %v3428
    %v3433 = vmul.f32 %v3429, %v3429
    %v3434 = vmul.f32 %v3430, %v3430
    %v3435 = vmul.f32 %v3431, %v3431
    %v3436 = vmul.f32 %v3432, %v3432
    %v3437 = vrot.slane %v3433, 4
    %v3438 = vadd.f32 %v3433, %v3437
    %v3439 = vrot.slane %v3438, 2
    %v3440 = vadd.f32 %v3438, %v3439
    %v3441 = vrot.slane %v3440, 1
    %v3442 = vadd.f32 %v3440, %v3441
    %v3443 = vrot.slane %v3434, 4
    %v3444 = vadd.f32 %v3434, %v3443
    %v3445 = vrot.slane %v3444, 2
    %v3446 = vadd.f32 %v3444, %v3445
    %v3447 = vrot.slane %v3446, 1
    %v3448 = vadd.f32 %v3446, %v3447
    %v3449 = vrot.slane %v3435, 4
    %v3450 = vadd.f32 %v3435, %v3449
    %v3451 = vrot.slane %v3450, 2
    %v3452 = vadd.f32 %v3450, %v3451
    %v3453 = vrot.slane %v3452, 1
    %v3454 = vadd.f32 %v3452, %v3453
    %v3455 = vrot.slane %v3436, 4
    %v3456 = vadd.f32 %v3436, %v3455
    %v3457 = vrot.slane %v3456, 2
    %v3458 = vadd.f32 %v3456, %v3457
    %v3459 = vrot.slane %v3458, 1
    %v3460 = vadd.f32 %v3458, %v3459
    %v3461 = vmul.f32 %v3442, %v3112
    %v3462 = vmul.f32 %v3448, %v3112
    %v3463 = vmul.f32 %v3454, %v3112
    %v3464 = vmul.f32 %v3460, %v3112
    %v3465 = vadd.f32 %v3461, 1e-05
    %v3466 = vadd.f32 %v3462, 1e-05
    %v3467 = vadd.f32 %v3463, 1e-05
    %v3468 = vadd.f32 %v3464, 1e-05
    %v3469 = vrsqrt.pop %v3465
    %v3470 = vmul.f32 %v3469, %v3465
    %v3471 = vmul.f32 %v3470, %v3469
    %v3472 = vmul.f32 0.5, %v3471
    %v3473 = vsub.f32 1.5, %v3472
    %v3474 = vmul.f32 %v3469, %v3473
    %vm3475 = vweird.f32 %v3465
    %vm3476 = vweird.f32 %v3469
    %vm3477 = vmor %vm3475, %vm3476
    %v3478 = vsel %vm3477, %v3469, %v3474
    %v3479 = vrsqrt.pop %v3466
    %v3480 = vmul.f32 %v3479, %v3466
    %v3481 = vmul.f32 %v3480, %v3479
    %v3482 = vmul.f32 0.5, %v3481
    %v3483 = vsub.f32 1.5, %v3482
    %v3484 = vmul.f32 %v3479, %v3483
    %vm3485 = vweird.f32 %v3466
    %vm3486 = vweird.f32 %v3479
    %vm3487 = vmor %vm3485, %vm3486
    %v3488 = vsel %vm3487, %v3479, %v3484
    %v3489 = vrsqrt.pop %v3467
    %v3490 = vmul.f32 %v3489, %v3467
    %v3491 = vmul.f32 %v3490, %v3489
    %v3492 = vmul.f32 0.5, %v3491
    %v3493 = vsub.f32 1.5, %v3492
    %v3494 = vmul.f32 %v3489, %v3493
    %vm3495 = vweird.f32 %v3467
    %vm3496 = vweird.f32 %v3489
    %vm3497 = vmor %vm3495, %vm3496
    %v3498 = vsel %vm3497, %v3489, %v3494
    %v3499 = vrsqrt.pop %v3468
    %v3500 = vmul.f32 %v3499, %v3468
    %v3501 = vmul.f32 %v3500, %v3499
    %v3502 = vmul.f32 0.5, %v3501
    %v3503 = vsub.f32 1.5, %v3502
    %v3504 = vmul.f32 %v3499, %v3503
    %vm3505 = vweird.f32 %v3468
    %vm3506 = vweird.f32 %v3499
    %vm3507 = vmor %vm3505, %vm3506
    %v3508 = vsel %vm3507, %v3499, %v3504
    %v3509 = vmul.f32 %v3429, %v3478
    %v3510 = vmul.f32 %v3430, %v3488
    %v3511 = vmul.f32 %v3431, %v3498
    %v3512 = vmul.f32 %v3432, %v3508
    %v3514 = vperm.slane %v3029, 0
    %v3515 = vperm.slane %v3029, 1
    %v3516 = vperm.slane %v3029, 2
    %v3517 = vperm.slane %v3029, 3
    %v3522 = vmul.f32 %v3509, %v3514
    %v3523 = vmul.f32 %v3510, %v3515
    %v3524 = vmul.f32 %v3511, %v3516
    %v3525 = vmul.f32 %v3512, %v3517
    %v3527 = vperm.slane %v3031, 0
    %v3528 = vperm.slane %v3031, 1
    %v3529 = vperm.slane %v3031, 2
    %v3530 = vperm.slane %v3031, 3
    %v3535 = vadd.f32 %v3522, %v3527
    %v3536 = vadd.f32 %v3523, %v3528
    %v3537 = vadd.f32 %v3524, %v3529
    %v3538 = vadd.f32 %v3525, %v3530
    %3540 = vset.pattern.permute.xlu0 0
    %3541 = vperm.xlu0 %3540, %v3386
    %v3542 = vpop.permute.xlu0 %3541
    %v3544 = vmul.f32 %v75, %v3542
    %v3545 = vmul.f32 %v76, %v3542
    %v3546 = vadd.f32 %v3544, %v3535
    %v3547 = vadd.f32 %v3545, %v3536
    %v3548 = vmax.f32 %v3546, 0.0
    %v3549 = vmax.f32 %v3547, 0.0
    %3550 = vst [vmem:[#allocation10] sm:$0xff] %v3548
    %3551 = vst [vmem:[#allocation10 + $0x8] sm:$0xff] %v3549
    %3553 = vset.pattern.permute.xlu0 0
    %3554 = vperm.xlu0 %3553, %v3387
    %v3555 = vpop.permute.xlu0 %3554
    %v3557 = vmul.f32 %v77, %v3555
    %v3558 = vmul.f32 %v78, %v3555
    %v3559 = vadd.f32 %v3557, %v3537
    %v3560 = vadd.f32 %v3558, %v3538
    %v3561 = vmax.f32 %v3559, 0.0
    %v3562 = vmax.f32 %v3560, 0.0
    %3563 = vst [vmem:[#allocation10 + $0x10] sm:$0xff] %v3561
    %3564 = vst [vmem:[#allocation10 + $0x18] sm:$0xff] %v3562
    // Predicated region
    $region34: #{tpu_custom_call.1} parent=1 // pred_check
      _
    $region35: #{tpu_custom_call.1} parent=1 // pred_check_branch
      %3566 = sbr.rel (0) target = $region37
    $region36: #{tpu_custom_call.1} parent=1 // pred_region
      %3568 = vsyncadd [#allocation4], 0
      %s3570 = sshll.u32 [#allocation10], 4
      %s3571 = int_to_ptr.vmem [resolvable:$true] %s3570
      %s3572 = sshll.u32 %s4, 4
      %s3573 = int_to_ptr.hbm [resolvable:$true] %s3572
      %3575 = dma.vmem_to_hbm [thread:$0]  %s3571, 512, %s3573, [#allocation4]
    $region37: #{tpu_custom_call.1} parent=1 // pred_fallthru
      _
    // Predicated region
    $region38: #{tpu_custom_call.1} parent=1 // pred_check
      _
    $region39: #{tpu_custom_call.1} parent=1 // pred_check_branch
      %3577 = sbr.rel (0) target = $region41
    $region40: #{tpu_custom_call.1} parent=1 // pred_region
      %3579 = dma.done [#allocation4], 512
    $region41: #{tpu_custom_call.1} parent=1 // pred_fallthru
      _
    %3580 = vsyncpa [#allocation3], 1
    %3581 = vsyncpa [#allocation6], 1
    %3582 = vsyncpa [#allocation9], 1
    %3583 = vsyncpa [#allocation4], 1

</llo_original>
